<compile_context>
chip_gen: v7x
topology: tpu7x:2x2x1
jax: 0.10.0
libtpu: 0.0.40
codegen_flags: <defaults>
</compile_context>

<pallas_src>
import jax
import jax.numpy as jnp
from jax import lax
from jax.experimental import pallas as pl
from jax.experimental.pallas import tpu as pltpu


def _round_up(n, m):
    return ((n + m - 1) // m) * m


def mlp_kernel(x_ref,
               w1_ref, b1_ref,
               w2_ref, b2_ref,
               w3_ref, b3_ref,
               w4_ref, b4_ref,
               o_ref):
    # x_ref : [TB, 4]   f32  (raw batch-major input tile)
    # w1    : [20, 4]   f32  (PyTorch layout [out, in])
    # w2/3/4: [out, in]  bf16
    # bN    : [out, 1]  f32
    # o_ref : [2, TB]   f32  (feature-major: batch on the lane axis)

    # fc1: contract the feature dim of BOTH operands (A @ B^T) so the result
    # comes out feature-major [20, TB]; this folds the input transpose into
    # the matmul instead of doing it in the wrapper. f32 + HIGHEST keeps the
    # tiny first layer exact and layout-friendly.
    h = lax.dot_general(w1_ref[...], x_ref[...],
                        dimension_numbers=(((1,), (1,)), ((), ())),
                        precision=lax.Precision.HIGHEST,
                        preferred_element_type=jnp.float32)
    h = jnp.maximum(h + b1_ref[...], 0.0).astype(jnp.bfloat16)      # [20, TB]

    h = jnp.dot(w2_ref[...], h, preferred_element_type=jnp.float32) + b2_ref[...]
    h = jnp.maximum(h, 0.0).astype(jnp.bfloat16)                    # [40, TB]

    h = jnp.dot(w3_ref[...], h, preferred_element_type=jnp.float32) + b3_ref[...]
    h = jnp.maximum(h, 0.0).astype(jnp.bfloat16)                    # [20, TB]

    out = jnp.dot(w4_ref[...], h, preferred_element_type=jnp.float32) + b4_ref[...]
    o_ref[...] = out.astype(o_ref.dtype)                            # [2, TB]


def net_forward(x, params, *, tb=8192):
    """x: [B, 4] float32. params: PyTorch-layout weights/biases. Returns [B, 2] f32.

    tb: requested batch tile (rows per grid step). Large by default — per-step
    VMEM footprint (x tile + out tile + resident weights) is only a few MiB at
    tb=8192, far below the scoped VMEM default on v5e/v6e/v7x, and bigger
    tiles amortize the ~0.35 us per-grid-step overhead.
    """
    B, F = x.shape
    assert F == 4, f"expected 4 input features, got {F}"

    ALIGN = 256  # full-width MXU pushes on v6e/v7x (and a lane multiple everywhere)
    bp_min = _round_up(B, ALIGN)
    TB = min(_round_up(min(tb, bp_min), ALIGN), bp_min)
    # v7x has 2 TensorCores: make sure the parallel grid axis has >= 2 steps
    # whenever the batch allows it, so both cores get work (harmless on
    # single-TC v5e/v6e: one extra ~0.35 us step).
    if bp_min >= 2 * ALIGN:
        TB = min(TB, _round_up(bp_min // 2, ALIGN))
    Bp = _round_up(B, TB)
    steps = Bp // TB

    if Bp != B:
        x = jnp.pad(x, ((0, Bp - B), (0, 0)))   # zero rows, sliced off below

    # fc1 stays f32 (tiny, and keeps the transposed-operand dot exact);
    # fc2/3/4 weights go to bf16 (MXU-push bound layers). Biases stay f32.
    w1 = params["w1"].astype(jnp.float32)
    w2 = params["w2"].astype(jnp.bfloat16)
    w3 = params["w3"].astype(jnp.bfloat16)
    w4 = params["w4"].astype(jnp.bfloat16)
    b1 = params["b1"].reshape(-1, 1).astype(jnp.float32)
    b2 = params["b2"].reshape(-1, 1).astype(jnp.float32)
    b3 = params["b3"].reshape(-1, 1).astype(jnp.float32)
    b4 = params["b4"].reshape(-1, 1).astype(jnp.float32)

    # Constant index_map -> weights/biases stay VMEM-resident across steps.
    resident = lambda a: pl.BlockSpec(a.shape, lambda i: (0, 0))

    out_t = pl.pallas_call(
        mlp_kernel,
        out_shape=jax.ShapeDtypeStruct((2, Bp), jnp.float32),
        grid=(steps,),
        in_specs=[pl.BlockSpec((TB, 4), lambda i: (i, 0)),
                  resident(w1), resident(b1),
                  resident(w2), resident(b2),
                  resident(w3), resident(b3),
                  resident(w4), resident(b4)],
        out_specs=pl.BlockSpec((2, TB), lambda i: (0, i)),
        compiler_params=pltpu.CompilerParams(
            dimension_semantics=("parallel",)),
    )(x, w1, b1, w2, b2, w3, b3, w4, b4)

    # Tiny [2, B] -> [B, 2] fix-up to preserve the nn.Module interface.
    return out_t[:, :B].T


def init_params(key):
    """Deterministic init mirroring PyTorch nn.Linear defaults
    (uniform(-1/sqrt(fan_in), 1/sqrt(fan_in))). Weights in PyTorch layout
    [out_features, in_features], biases [out_features]."""
    dims = [(4, 20), (20, 40), (40, 20), (20, 2)]
    params = {}
    for i, (fan_in, fan_out) in enumerate(dims, start=1):
        key, kw, kb = jax.random.split(key, 3)
        bound = 1.0 / (fan_in ** 0.5)
        params[f"w{i}"] = jax.random.uniform(
            kw, (fan_out, fan_in), jnp.float32, minval=-bound, maxval=bound)
        params[f"b{i}"] = jax.random.uniform(
            kb, (fan_out,), jnp.float32, minval=-bound, maxval=bound)
    return params


def reference_forward(x, params):
    """Plain-JAX reference that mimics the kernel's numerics: fc1 in f32,
    bf16 operands + f32 accumulation for fc2/3/4, bf16 re-cast of the
    intermediate activations."""
    hp = lax.Precision.HIGHEST
    bf = lambda a: a.astype(jnp.bfloat16)
    h = jnp.dot(x, params["w1"].T, precision=hp,
                preferred_element_type=jnp.float32) + params["b1"]
    h = bf(jnp.maximum(h, 0.0))
    h = jnp.dot(h, bf(params["w2"]).T, precision=hp,
                preferred_element_type=jnp.float32) + params["b2"]
    h = bf(jnp.maximum(h, 0.0))
    h = jnp.dot(h, bf(params["w3"]).T, precision=hp,
                preferred_element_type=jnp.float32) + params["b3"]
    h = bf(jnp.maximum(h, 0.0))
    return jnp.dot(h, bf(params["w4"]).T, precision=hp,
                   preferred_element_type=jnp.float32) + params["b4"]


if __name__ == "__main__":
    key = jax.random.PRNGKey(0)
    key_x, key_p = jax.random.split(key)
    params = init_params(key_p)

    # Small batch, deliberately NOT a multiple of 256, exercising padding and
    # the >=2-step grid path.
    B = 300
    x = jax.random.normal(key_x, (B, 4), jnp.float32)
    out = jax.block_until_ready(net_forward(x, params))
    ref = reference_forward(x, params)
    assert out.shape == (B, 2), out.shape
    max_err = jnp.max(jnp.abs(out - ref))
    assert jnp.allclose(out, ref, atol=5e-3, rtol=5e-3), f"max abs diff {max_err}"

    # Tiny batch (single grid step, heavy zero padding) as a second check.
    B2 = 64
    x2 = jax.random.normal(key_x, (B2, 4), jnp.float32)
    out2 = jax.block_until_ready(net_forward(x2, params))
    ref2 = reference_forward(x2, params)
    assert out2.shape == (B2, 2), out2.shape
    assert jnp.allclose(out2, ref2, atol=5e-3, rtol=5e-3)

    print("KERNEL_OK")
</pallas_src>

<mosaic_0001>
module attributes {stable_mosaic.version = 11 : i64} {
  func.func @mlp_kernel(%arg0: i32, %arg1: memref<256x4xf32, #tpu.memory_space<vmem>>, %arg2: memref<20x4xf32, #tpu.memory_space<vmem>>, %arg3: memref<20x1xf32, #tpu.memory_space<vmem>>, %arg4: memref<40x20xbf16, #tpu.memory_space<vmem>>, %arg5: memref<40x1xf32, #tpu.memory_space<vmem>>, %arg6: memref<20x40xbf16, #tpu.memory_space<vmem>>, %arg7: memref<20x1xf32, #tpu.memory_space<vmem>>, %arg8: memref<2x20xbf16, #tpu.memory_space<vmem>>, %arg9: memref<2x1xf32, #tpu.memory_space<vmem>>, %arg10: memref<2x256xf32, #tpu.memory_space<vmem>>) attributes {dimension_semantics = [#tpu.dimension_semantics<parallel>], iteration_bounds = array<i64: 2>, scalar_prefetch = 0 : i64, scratch_operands = 0 : i64, tpu.core_type = #tpu.core_type<tc>, window_params = [{transform_indices = @transform_0, window_bounds = array<i64: 256, 4>}, {pipeline_mode = #tpu.pipeline_mode<synchronous>, transform_indices = @transform_1, window_bounds = array<i64: 20, 4>}, {pipeline_mode = #tpu.pipeline_mode<synchronous>, transform_indices = @transform_2, window_bounds = array<i64: 20, 1>}, {pipeline_mode = #tpu.pipeline_mode<synchronous>, transform_indices = @transform_3, window_bounds = array<i64: 40, 20>}, {pipeline_mode = #tpu.pipeline_mode<synchronous>, transform_indices = @transform_4, window_bounds = array<i64: 40, 1>}, {pipeline_mode = #tpu.pipeline_mode<synchronous>, transform_indices = @transform_5, window_bounds = array<i64: 20, 40>}, {pipeline_mode = #tpu.pipeline_mode<synchronous>, transform_indices = @transform_6, window_bounds = array<i64: 20, 1>}, {pipeline_mode = #tpu.pipeline_mode<synchronous>, transform_indices = @transform_7, window_bounds = array<i64: 2, 20>}, {pipeline_mode = #tpu.pipeline_mode<synchronous>, transform_indices = @transform_8, window_bounds = array<i64: 2, 1>}, {transform_indices = @transform_9, window_bounds = array<i64: 2, 256>}]} {
    %c0 = arith.constant 0 : index
    %c0_0 = arith.constant 0 : index
    %0 = vector.load %arg2[%c0, %c0_0] : memref<20x4xf32, #tpu.memory_space<vmem>>, vector<20x4xf32>
    %c0_1 = arith.constant 0 : index
    %c0_2 = arith.constant 0 : index
    %1 = vector.load %arg1[%c0_1, %c0_2] : memref<256x4xf32, #tpu.memory_space<vmem>>, vector<256x4xf32>
    %cst = arith.constant dense<0.000000e+00> : vector<20x256xf32>
    %2 = tpu.matmul %0, %1, %cst {dimension_numbers = #tpu.dot_dimension_numbers<[1], [1], [0], [0], [0, 0, 1, 0], [], []>, precision = #tpu.contract_precision<fp32>} : vector<20x4xf32>, vector<256x4xf32>, vector<20x256xf32> -> vector<20x256xf32>
    %c0_3 = arith.constant 0 : index
    %c0_4 = arith.constant 0 : index
    %3 = vector.load %arg3[%c0_3, %c0_4] : memref<20x1xf32, #tpu.memory_space<vmem>>, vector<20x1xf32>
    %4 = vector.broadcast %3 : vector<20x1xf32> to vector<20x256xf32>
    %5 = arith.addf %2, %4 : vector<20x256xf32>
    %cst_5 = arith.constant 0.000000e+00 : f32
    %6 = vector.broadcast %cst_5 : f32 to vector<20x256xf32>
    %7 = arith.maximumf %5, %6 : vector<20x256xf32>
    %8 = arith.truncf %7 : vector<20x256xf32> to vector<20x256xbf16>
    %c0_6 = arith.constant 0 : index
    %c0_7 = arith.constant 0 : index
    %9 = vector.load %arg4[%c0_6, %c0_7] : memref<40x20xbf16, #tpu.memory_space<vmem>>, vector<40x20xbf16>
    %cst_8 = arith.constant dense<0.000000e+00> : vector<40x256xf32>
    %10 = tpu.matmul %9, %8, %cst_8 {dimension_numbers = #tpu.dot_dimension_numbers<[1], [0], [0], [1], [0, 0, 1, 1], [], []>} : vector<40x20xbf16>, vector<20x256xbf16>, vector<40x256xf32> -> vector<40x256xf32>
    %c0_9 = arith.constant 0 : index
    %c0_10 = arith.constant 0 : index
    %11 = vector.load %arg5[%c0_9, %c0_10] : memref<40x1xf32, #tpu.memory_space<vmem>>, vector<40x1xf32>
    %12 = vector.broadcast %11 : vector<40x1xf32> to vector<40x256xf32>
    %13 = arith.addf %10, %12 : vector<40x256xf32>
    %cst_11 = arith.constant 0.000000e+00 : f32
    %14 = vector.broadcast %cst_11 : f32 to vector<40x256xf32>
    %15 = arith.maximumf %13, %14 : vector<40x256xf32>
    %16 = arith.truncf %15 : vector<40x256xf32> to vector<40x256xbf16>
    %c0_12 = arith.constant 0 : index
    %c0_13 = arith.constant 0 : index
    %17 = vector.load %arg6[%c0_12, %c0_13] : memref<20x40xbf16, #tpu.memory_space<vmem>>, vector<20x40xbf16>
    %cst_14 = arith.constant dense<0.000000e+00> : vector<20x256xf32>
    %18 = tpu.matmul %17, %16, %cst_14 {dimension_numbers = #tpu.dot_dimension_numbers<[1], [0], [0], [1], [0, 0, 1, 1], [], []>} : vector<20x40xbf16>, vector<40x256xbf16>, vector<20x256xf32> -> vector<20x256xf32>
    %c0_15 = arith.constant 0 : index
    %c0_16 = arith.constant 0 : index
    %19 = vector.load %arg7[%c0_15, %c0_16] : memref<20x1xf32, #tpu.memory_space<vmem>>, vector<20x1xf32>
    %20 = vector.broadcast %19 : vector<20x1xf32> to vector<20x256xf32>
    %21 = arith.addf %18, %20 : vector<20x256xf32>
    %cst_17 = arith.constant 0.000000e+00 : f32
    %22 = vector.broadcast %cst_17 : f32 to vector<20x256xf32>
    %23 = arith.maximumf %21, %22 : vector<20x256xf32>
    %24 = arith.truncf %23 : vector<20x256xf32> to vector<20x256xbf16>
    %c0_18 = arith.constant 0 : index
    %c0_19 = arith.constant 0 : index
    %25 = vector.load %arg8[%c0_18, %c0_19] : memref<2x20xbf16, #tpu.memory_space<vmem>>, vector<2x20xbf16>
    %cst_20 = arith.constant dense<0.000000e+00> : vector<2x256xf32>
    %26 = tpu.matmul %25, %24, %cst_20 {dimension_numbers = #tpu.dot_dimension_numbers<[1], [0], [0], [1], [0, 0, 1, 1], [], []>} : vector<2x20xbf16>, vector<20x256xbf16>, vector<2x256xf32> -> vector<2x256xf32>
    %c0_21 = arith.constant 0 : index
    %c0_22 = arith.constant 0 : index
    %27 = vector.load %arg9[%c0_21, %c0_22] : memref<2x1xf32, #tpu.memory_space<vmem>>, vector<2x1xf32>
    %28 = vector.broadcast %27 : vector<2x1xf32> to vector<2x256xf32>
    %29 = arith.addf %26, %28 : vector<2x256xf32>
    %c0_23 = arith.constant 0 : index
    %c0_24 = arith.constant 0 : index
    %30 = vector.load %arg10[%c0_23, %c0_24] : memref<2x256xf32, #tpu.memory_space<vmem>>, vector<2x256xf32>
    tpu.vector_store %arg10[%c0_23, %c0_24], %29 {strides = array<i32>} : memref<2x256xf32, #tpu.memory_space<vmem>>, vector<2x256xf32>,
    return
  }
  func.func @transform_0(%arg0: i32) -> (i32, i32) {
    %c0_i32 = arith.constant 0 : i32
    %c0_i32_0 = arith.constant 0 : i32
    return %arg0, %c0_i32 : i32, i32
  }
  func.func @transform_1(%arg0: i32) -> (i32, i32) {
    %c0_i32 = arith.constant 0 : i32
    %c0_i32_0 = arith.constant 0 : i32
    %c0_i32_1 = arith.constant 0 : i32
    return %c0_i32, %c0_i32_0 : i32, i32
  }
  func.func @transform_2(%arg0: i32) -> (i32, i32) {
    %c0_i32 = arith.constant 0 : i32
    %c0_i32_0 = arith.constant 0 : i32
    %c0_i32_1 = arith.constant 0 : i32
    return %c0_i32, %c0_i32_0 : i32, i32
  }
  func.func @transform_3(%arg0: i32) -> (i32, i32) {
    %c0_i32 = arith.constant 0 : i32
    %c0_i32_0 = arith.constant 0 : i32
    %c0_i32_1 = arith.constant 0 : i32
    return %c0_i32, %c0_i32_0 : i32, i32
  }
  func.func @transform_4(%arg0: i32) -> (i32, i32) {
    %c0_i32 = arith.constant 0 : i32
    %c0_i32_0 = arith.constant 0 : i32
    %c0_i32_1 = arith.constant 0 : i32
    return %c0_i32, %c0_i32_0 : i32, i32
  }
  func.func @transform_5(%arg0: i32) -> (i32, i32) {
    %c0_i32 = arith.constant 0 : i32
    %c0_i32_0 = arith.constant 0 : i32
    %c0_i32_1 = arith.constant 0 : i32
    return %c0_i32, %c0_i32_0 : i32, i32
  }
  func.func @transform_6(%arg0: i32) -> (i32, i32) {
    %c0_i32 = arith.constant 0 : i32
    %c0_i32_0 = arith.constant 0 : i32
    %c0_i32_1 = arith.constant 0 : i32
    return %c0_i32, %c0_i32_0 : i32, i32
  }
  func.func @transform_7(%arg0: i32) -> (i32, i32) {
    %c0_i32 = arith.constant 0 : i32
    %c0_i32_0 = arith.constant 0 : i32
    %c0_i32_1 = arith.constant 0 : i32
    return %c0_i32, %c0_i32_0 : i32, i32
  }
  func.func @transform_8(%arg0: i32) -> (i32, i32) {
    %c0_i32 = arith.constant 0 : i32
    %c0_i32_0 = arith.constant 0 : i32
    %c0_i32_1 = arith.constant 0 : i32
    return %c0_i32, %c0_i32_0 : i32, i32
  }
  func.func @transform_9(%arg0: i32) -> (i32, i32) {
    %c0_i32 = arith.constant 0 : i32
    %c0_i32_0 = arith.constant 0 : i32
    return %c0_i32, %arg0 : i32, i32
  }
}

</mosaic_0001>

<llo_original>
// kernel: tpu_custom_call.1
$region0: #{tpu_custom_call.1}
  #allocation0 [shape = 'u32[]', space=smem, size = 0x4, offset = 0x4, fixed_abs, tag = 'smem constant byte address 0x4 - core index']
  #allocation1 [shape = 'u32[144,128]{1,0:T(1,128)}', space=vmem, size = 0x12000, scoped, tag = 'internal scratch']
  %s0 = inlined_call_operand.vmem [shape: f32[512,4], index: 0, kind: input, shape index: {}]
  %s1 = inlined_call_operand.vmem [shape: f32[20,4], index: 1, kind: input, shape index: {}]
  %s2 = inlined_call_operand.vmem [shape: f32[20,1], index: 2, kind: input, shape index: {}]
  %s3 = inlined_call_operand.vmem [shape: bf16[40,20], index: 3, kind: input, shape index: {}]
  %s4 = inlined_call_operand.vmem [shape: f32[40,1], index: 4, kind: input, shape index: {}]
  %s5 = inlined_call_operand.vmem [shape: bf16[20,40], index: 5, kind: input, shape index: {}]
  %s6 = inlined_call_operand.vmem [shape: f32[20,1], index: 6, kind: input, shape index: {}]
  %s7 = inlined_call_operand.vmem [shape: bf16[2,20], index: 7, kind: input, shape index: {}]
  %s8 = inlined_call_operand.vmem [shape: f32[2,1], index: 8, kind: input, shape index: {}]
  %s9 = inlined_call_operand.hbm [shape: f32[2,512], index: 9, kind: output, shape index: {}]
  %s10 = sld [smem:[#allocation0]]
  $region69: #{tpu_custom_call.1} parent=0
    _
  %s12 = ssub.s32 1, %s10
  %s13 = scalar_select 0, %s12, %s10
  $region1: #{tpu_custom_call.1} parent=0
    #allocation2 [shape = 'u8[4096]{0}', space=vmem, size = 0x1000, scoped, tag = 'output window, operand 0']
    #allocation3 [shape = 's32[2]{0}', space=sflag, size = 0x8, scoped, tag = 'scoped memory for tpu_custom_call.1']
    %14 = vsyncpa [#allocation3], 0
    %s15 = scalar_lea.sflag [#allocation3], 1
    %16 = vsyncpa %s15, 0
    loop: start=0, step=1, limit=4
    $region2: #{tpu_custom_call.1} parent=1 // loop_pre_header
      _
    $region3: #{tpu_custom_call.1} parent=1 // loop_header
      %s18 = sphi 0, %s22
      %p19 = scmp.ge.s32.totalorder %s18, 4
      %s28 = sphi 0, %s30
      %s31 = sphi 0, %s28
      %s32 = sphi 0, %s31
      %s48 = sphi 0, %s32
      %s52 = sphi 0, %s52
      %s54 = sphi 0, %s52
      %s55 = sphi 0, %s54
      %s69 = sphi 0, %s55
      %s73 = sphi 0, %s73
      %s75 = sphi 0, %s73
      %s76 = sphi 0, %s75
      %s90 = sphi 0, %s76
      %s94 = sphi 0, %s94
      %s96 = sphi 0, %s94
      %s97 = sphi 0, %s96
      %s111 = sphi 0, %s97
      %s115 = sphi 0, %s115
      %s117 = sphi 0, %s115
      %s118 = sphi 0, %s117
      %s132 = sphi 0, %s118
      %s136 = sphi 0, %s136
      %s138 = sphi 0, %s136
      %s139 = sphi 0, %s138
      %s153 = sphi 0, %s139
      %s157 = sphi 0, %s157
      %s159 = sphi 0, %s157
      %s160 = sphi 0, %s159
      %s174 = sphi 0, %s160
      %s178 = sphi 0, %s178
      %s180 = sphi 0, %s178
      %s181 = sphi 0, %s180
      %s195 = sphi 0, %s181
      %s199 = sphi 0, %s199
      %s201 = sphi 0, %s199
      %s202 = sphi 0, %s201
      %s216 = sphi 0, %s202
      %s222 = sphi 0, %s224
      %s225 = sphi 0, %s222
      %s226 = sphi 0, %s225
      %s242 = sphi 0, %s226
    $region4: #{tpu_custom_call.1} parent=1 // loop_header_branch
      %21 = sbr.rel (%p19) target = $region8
    $region5: #{tpu_custom_call.1} parent=1 // loop_body
      %s23 = ssub.s32 %s18, 1
      %s24 = ssub.s32 %s18, 2
      %s25 = sadd.s32 %s18, 1
      %s26 = ssub.s32 %s18, %s25
      %p27 = scmp.eq.s32.totalorder %s26, 0
      %s29 = sadd.s32 %s28, 1
      %s30 = scalar_select %p27, %s28, %s29
      %p33 = pneg %p27
      %p34 = scmp.eq.s32.totalorder %s18, 1
      %p35 = por %p33, %p34
      %p36 = scmp.ne.s32.totalorder %s28, %s31
      %p37 = scmp.eq.s32.totalorder %s18, 0
      %p38 = por %p36, %p37
      %p39 = scmp.ne.s32.totalorder %s28, %s31
      %p40 = scmp.eq.s32.totalorder %s23, 1
      %p41 = por %p39, %p40
      %p42 = scmp.ne.s32.totalorder %s31, %s32
      %p43 = scmp.eq.s32.totalorder %s23, 0
      %p44 = por %p42, %p43
      %p45 = scmp.ne.s32.totalorder %s31, %s32
      %p46 = scmp.eq.s32.totalorder %s24, 1
      %p47 = por %p45, %p46
      %p49 = scmp.ne.s32.totalorder %s32, %s48
      %p50 = scmp.eq.s32.totalorder %s24, 0
      %p51 = por %p49, %p50
      %s53 = sadd.s32 %s52, 1
      %p56 = scmp.eq.s32.totalorder %s18, 1
      %p57 = scmp.ne.s32.totalorder %s52, %s54
      %p58 = scmp.eq.s32.totalorder %s18, 0
      %p59 = por %p57, %p58
      %p60 = scmp.ne.s32.totalorder %s52, %s54
      %p61 = scmp.eq.s32.totalorder %s23, 1
      %p62 = por %p60, %p61
      %p63 = scmp.ne.s32.totalorder %s54, %s55
      %p64 = scmp.eq.s32.totalorder %s23, 0
      %p65 = por %p63, %p64
      %p66 = scmp.ne.s32.totalorder %s54, %s55
      %p67 = scmp.eq.s32.totalorder %s24, 1
      %p68 = por %p66, %p67
      %p70 = scmp.ne.s32.totalorder %s55, %s69
      %p71 = scmp.eq.s32.totalorder %s24, 0
      %p72 = por %p70, %p71
      %s74 = sadd.s32 %s73, 1
      %p77 = scmp.eq.s32.totalorder %s18, 1
      %p78 = scmp.ne.s32.totalorder %s73, %s75
      %p79 = scmp.eq.s32.totalorder %s18, 0
      %p80 = por %p78, %p79
      %p81 = scmp.ne.s32.totalorder %s73, %s75
      %p82 = scmp.eq.s32.totalorder %s23, 1
      %p83 = por %p81, %p82
      %p84 = scmp.ne.s32.totalorder %s75, %s76
      %p85 = scmp.eq.s32.totalorder %s23, 0
      %p86 = por %p84, %p85
      %p87 = scmp.ne.s32.totalorder %s75, %s76
      %p88 = scmp.eq.s32.totalorder %s24, 1
      %p89 = por %p87, %p88
      %p91 = scmp.ne.s32.totalorder %s76, %s90
      %p92 = scmp.eq.s32.totalorder %s24, 0
      %p93 = por %p91, %p92
      %s95 = sadd.s32 %s94, 1
      %p98 = scmp.eq.s32.totalorder %s18, 1
      %p99 = scmp.ne.s32.totalorder %s94, %s96
      %p100 = scmp.eq.s32.totalorder %s18, 0
      %p101 = por %p99, %p100
      %p102 = scmp.ne.s32.totalorder %s94, %s96
      %p103 = scmp.eq.s32.totalorder %s23, 1
      %p104 = por %p102, %p103
      %p105 = scmp.ne.s32.totalorder %s96, %s97
      %p106 = scmp.eq.s32.totalorder %s23, 0
      %p107 = por %p105, %p106
      %p108 = scmp.ne.s32.totalorder %s96, %s97
      %p109 = scmp.eq.s32.totalorder %s24, 1
      %p110 = por %p108, %p109
      %p112 = scmp.ne.s32.totalorder %s97, %s111
      %p113 = scmp.eq.s32.totalorder %s24, 0
      %p114 = por %p112, %p113
      %s116 = sadd.s32 %s115, 1
      %p119 = scmp.eq.s32.totalorder %s18, 1
      %p120 = scmp.ne.s32.totalorder %s115, %s117
      %p121 = scmp.eq.s32.totalorder %s18, 0
      %p122 = por %p120, %p121
      %p123 = scmp.ne.s32.totalorder %s115, %s117
      %p124 = scmp.eq.s32.totalorder %s23, 1
      %p125 = por %p123, %p124
      %p126 = scmp.ne.s32.totalorder %s117, %s118
      %p127 = scmp.eq.s32.totalorder %s23, 0
      %p128 = por %p126, %p127
      %p129 = scmp.ne.s32.totalorder %s117, %s118
      %p130 = scmp.eq.s32.totalorder %s24, 1
      %p131 = por %p129, %p130
      %p133 = scmp.ne.s32.totalorder %s118, %s132
      %p134 = scmp.eq.s32.totalorder %s24, 0
      %p135 = por %p133, %p134
      %s137 = sadd.s32 %s136, 1
      %p140 = scmp.eq.s32.totalorder %s18, 1
      %p141 = scmp.ne.s32.totalorder %s136, %s138
      %p142 = scmp.eq.s32.totalorder %s18, 0
      %p143 = por %p141, %p142
      %p144 = scmp.ne.s32.totalorder %s136, %s138
      %p145 = scmp.eq.s32.totalorder %s23, 1
      %p146 = por %p144, %p145
      %p147 = scmp.ne.s32.totalorder %s138, %s139
      %p148 = scmp.eq.s32.totalorder %s23, 0
      %p149 = por %p147, %p148
      %p150 = scmp.ne.s32.totalorder %s138, %s139
      %p151 = scmp.eq.s32.totalorder %s24, 1
      %p152 = por %p150, %p151
      %p154 = scmp.ne.s32.totalorder %s139, %s153
      %p155 = scmp.eq.s32.totalorder %s24, 0
      %p156 = por %p154, %p155
      %s158 = sadd.s32 %s157, 1
      %p161 = scmp.eq.s32.totalorder %s18, 1
      %p162 = scmp.ne.s32.totalorder %s157, %s159
      %p163 = scmp.eq.s32.totalorder %s18, 0
      %p164 = por %p162, %p163
      %p165 = scmp.ne.s32.totalorder %s157, %s159
      %p166 = scmp.eq.s32.totalorder %s23, 1
      %p167 = por %p165, %p166
      %p168 = scmp.ne.s32.totalorder %s159, %s160
      %p169 = scmp.eq.s32.totalorder %s23, 0
      %p170 = por %p168, %p169
      %p171 = scmp.ne.s32.totalorder %s159, %s160
      %p172 = scmp.eq.s32.totalorder %s24, 1
      %p173 = por %p171, %p172
      %p175 = scmp.ne.s32.totalorder %s160, %s174
      %p176 = scmp.eq.s32.totalorder %s24, 0
      %p177 = por %p175, %p176
      %s179 = sadd.s32 %s178, 1
      %p182 = scmp.eq.s32.totalorder %s18, 1
      %p183 = scmp.ne.s32.totalorder %s178, %s180
      %p184 = scmp.eq.s32.totalorder %s18, 0
      %p185 = por %p183, %p184
      %p186 = scmp.ne.s32.totalorder %s178, %s180
      %p187 = scmp.eq.s32.totalorder %s23, 1
      %p188 = por %p186, %p187
      %p189 = scmp.ne.s32.totalorder %s180, %s181
      %p190 = scmp.eq.s32.totalorder %s23, 0
      %p191 = por %p189, %p190
      %p192 = scmp.ne.s32.totalorder %s180, %s181
      %p193 = scmp.eq.s32.totalorder %s24, 1
      %p194 = por %p192, %p193
      %p196 = scmp.ne.s32.totalorder %s181, %s195
      %p197 = scmp.eq.s32.totalorder %s24, 0
      %p198 = por %p196, %p197
      %s200 = sadd.s32 %s199, 1
      %p203 = scmp.eq.s32.totalorder %s18, 1
      %p204 = scmp.ne.s32.totalorder %s199, %s201
      %p205 = scmp.eq.s32.totalorder %s18, 0
      %p206 = por %p204, %p205
      %p207 = scmp.ne.s32.totalorder %s199, %s201
      %p208 = scmp.eq.s32.totalorder %s23, 1
      %p209 = por %p207, %p208
      %p210 = scmp.ne.s32.totalorder %s201, %s202
      %p211 = scmp.eq.s32.totalorder %s23, 0
      %p212 = por %p210, %p211
      %p213 = scmp.ne.s32.totalorder %s201, %s202
      %p214 = scmp.eq.s32.totalorder %s24, 1
      %p215 = por %p213, %p214
      %p217 = scmp.ne.s32.totalorder %s202, %s216
      %p218 = scmp.eq.s32.totalorder %s24, 0
      %p219 = por %p217, %p218
      %s220 = ssub.s32 %s18, %s25
      %p221 = scmp.eq.s32.totalorder %s220, 0
      %s223 = sadd.s32 %s222, 1
      %s224 = scalar_select %p221, %s222, %s223
      %p227 = pneg %p221
      %p228 = scmp.eq.s32.totalorder %s18, 1
      %p229 = por %p227, %p228
      %p230 = scmp.ne.s32.totalorder %s222, %s225
      %p231 = scmp.eq.s32.totalorder %s18, 0
      %p232 = por %p230, %p231
      %p233 = scmp.ne.s32.totalorder %s222, %s225
      %p234 = scmp.eq.s32.totalorder %s23, 1
      %p235 = por %p233, %p234
      %p236 = scmp.ne.s32.totalorder %s225, %s226
      %p237 = scmp.eq.s32.totalorder %s23, 0
      %p238 = por %p236, %p237
      %p239 = scmp.ne.s32.totalorder %s225, %s226
      %p240 = scmp.eq.s32.totalorder %s24, 1
      %p241 = por %p239, %p240
      %p243 = scmp.ne.s32.totalorder %s226, %s242
      %p244 = scmp.eq.s32.totalorder %s24, 0
      %p245 = por %p243, %p244
      %p246 = scmp.le.s32.totalorder 1, %s18
      %p247 = scmp.lt.s32.totalorder %s18, 3
      %p248 = pnand %p246, %p247
      %p249 = pneg %p248
      // Predicated region
      $region9: #{tpu_custom_call.1} parent=5 // pred_check
        _
      $region10: #{tpu_custom_call.1} parent=5 // pred_check_branch
        %251 = sbr.rel (%p248) target = $region12
      $region11: #{tpu_custom_call.1} parent=5 // pred_region
        %s252 = ssub.s32 %s18, 1
        // Predicated region
        $region13: #{tpu_custom_call.1} parent=11 // pred_check
          %p253 = pneg %p65
        $region14: #{tpu_custom_call.1} parent=11 // pred_check_branch
          %255 = sbr.rel (%p253) target = $region16
        $region15: #{tpu_custom_call.1} parent=11 // pred_region
          _
        $region16: #{tpu_custom_call.1} parent=11 // pred_fallthru
          _
        // Predicated region
        $region17: #{tpu_custom_call.1} parent=11 // pred_check
          %p256 = pneg %p86
        $region18: #{tpu_custom_call.1} parent=11 // pred_check_branch
          %258 = sbr.rel (%p256) target = $region20
        $region19: #{tpu_custom_call.1} parent=11 // pred_region
          _
        $region20: #{tpu_custom_call.1} parent=11 // pred_fallthru
          _
        // Predicated region
        $region21: #{tpu_custom_call.1} parent=11 // pred_check
          %p259 = pneg %p107
        $region22: #{tpu_custom_call.1} parent=11 // pred_check_branch
          %261 = sbr.rel (%p259) target = $region24
        $region23: #{tpu_custom_call.1} parent=11 // pred_region
          _
        $region24: #{tpu_custom_call.1} parent=11 // pred_fallthru
          _
        // Predicated region
        $region25: #{tpu_custom_call.1} parent=11 // pred_check
          %p262 = pneg %p128
        $region26: #{tpu_custom_call.1} parent=11 // pred_check_branch
          %264 = sbr.rel (%p262) target = $region28
        $region27: #{tpu_custom_call.1} parent=11 // pred_region
          _
        $region28: #{tpu_custom_call.1} parent=11 // pred_fallthru
          _
        // Predicated region
        $region29: #{tpu_custom_call.1} parent=11 // pred_check
          %p265 = pneg %p149
        $region30: #{tpu_custom_call.1} parent=11 // pred_check_branch
          %267 = sbr.rel (%p265) target = $region32
        $region31: #{tpu_custom_call.1} parent=11 // pred_region
          _
        $region32: #{tpu_custom_call.1} parent=11 // pred_fallthru
          _
        // Predicated region
        $region33: #{tpu_custom_call.1} parent=11 // pred_check
          %p268 = pneg %p170
        $region34: #{tpu_custom_call.1} parent=11 // pred_check_branch
          %270 = sbr.rel (%p268) target = $region36
        $region35: #{tpu_custom_call.1} parent=11 // pred_region
          _
        $region36: #{tpu_custom_call.1} parent=11 // pred_fallthru
          _
        // Predicated region
        $region37: #{tpu_custom_call.1} parent=11 // pred_check
          %p271 = pneg %p191
        $region38: #{tpu_custom_call.1} parent=11 // pred_check_branch
          %273 = sbr.rel (%p271) target = $region40
        $region39: #{tpu_custom_call.1} parent=11 // pred_region
          _
        $region40: #{tpu_custom_call.1} parent=11 // pred_fallthru
          _
        // Predicated region
        $region41: #{tpu_custom_call.1} parent=11 // pred_check
          %p274 = pneg %p212
        $region42: #{tpu_custom_call.1} parent=11 // pred_check_branch
          %276 = sbr.rel (%p274) target = $region44
        $region43: #{tpu_custom_call.1} parent=11 // pred_region
          _
        $region44: #{tpu_custom_call.1} parent=11 // pred_fallthru
          _
      $region12: #{tpu_custom_call.1} parent=5 // pred_fallthru
        _
      %p277 = scmp.lt.s32.totalorder %s18, 2
      // Predicated region
      $region45: #{tpu_custom_call.1} parent=5 // pred_check
        %p278 = pneg %p277
      $region46: #{tpu_custom_call.1} parent=5 // pred_check_branch
        %280 = sbr.rel (%p278) target = $region48
      $region47: #{tpu_custom_call.1} parent=5 // pred_region
        // Predicated region
        $region49: #{tpu_custom_call.1} parent=47 // pred_check
          %p281 = pneg %p38
        $region50: #{tpu_custom_call.1} parent=47 // pred_check_branch
          %283 = sbr.rel (%p281) target = $region52
        $region51: #{tpu_custom_call.1} parent=47 // pred_region
          %s284 = smul.u32 32, %s18
          %p285 = scmp.lt.s32.totalorder %s284, 63
          %s286 = scalar_select %p285, %s284, 63
          %s287 = smul.addr %s286, 8
          %s288 = scalar_lea.vmem %s0, %s287
          %s289 = smul.u32 32, %s18
        $region52: #{tpu_custom_call.1} parent=47 // pred_fallthru
          _
      $region48: #{tpu_custom_call.1} parent=5 // pred_fallthru
        _
      %p290 = scmp.le.s32.totalorder 1, %s18
      %p291 = scmp.lt.s32.totalorder %s18, 3
      %p292 = pnand %p290, %p291
      %p293 = pneg %p292
      // Predicated region
      $region53: #{tpu_custom_call.1} parent=5 // pred_check
        _
      $region54: #{tpu_custom_call.1} parent=5 // pred_check_branch
        %295 = sbr.rel (%p292) target = $region56
      $region55: #{tpu_custom_call.1} parent=5 // pred_region
        %s296 = ssub.s32 %s18, 1
        %s297 = smul.u32 32, %s23
        %p298 = scmp.lt.s32.totalorder %s297, 63
        %s299 = scalar_select %p298, %s297, 63
        %s300 = smul.addr %s299, 8
        %s301 = scalar_lea.vmem %s0, %s300
        %p302 = pneg %p44
        %p303 = pneg %p41
        %p304 = pneg %p65
        %p305 = pneg %p62
        %p306 = pneg %p86
        %p307 = pneg %p83
        %p308 = pneg %p107
        %p309 = pneg %p104
        %p310 = pneg %p128
        %p311 = pneg %p125
        %p312 = pneg %p149
        %p313 = pneg %p146
        %p314 = pneg %p170
        %p315 = pneg %p167
        %p316 = pneg %p191
        %p317 = pneg %p188
        %p318 = pneg %p212
        %p319 = pneg %p209
        %p320 = pneg %p238
        %p321 = pneg %p235
        %s322 = sand.u32 %s225, 1
        %s323 = scalar_lea.sflag [#allocation3], %s322
        %s324 = sand.u32 %s225, 1
        %s325 = smul.addr %s324, 4
        %s326 = scalar_lea.vmem [#allocation2], %s325
        %s327 = smul.u32 32, %s23
        %p328 = scmp.lt.s32.totalorder %s327, 63
        %s329 = scalar_select %p328, %s327, 63
        %s330 = smul.addr %s329, 8
        %s331 = scalar_lea.vmem %s0, %s330
        %s332 = smul.u32 32, %s23
        %s333 = smul.u32 2, %s23
        %v335 = vld [vmem:[%s1] sm:$0xff]
        %v336 = vld [vmem:[%s1 + $0x8] sm:$0xff]
        %v337 = vld [vmem:[%s1 + $0x10] sm:$0xf]
        %v338 = vld [vmem:[%s331] sm:$0xff]
        %v339 = vld [vmem:[%s331 + $0x8] sm:$0xff]
        %v340 = vld [vmem:[%s331 + $0x10] sm:$0xff]
        %v341 = vld [vmem:[%s331 + $0x18] sm:$0xff]
        %v342 = vld [vmem:[%s331 + $0x20] sm:$0xff]
        %v343 = vld [vmem:[%s331 + $0x28] sm:$0xff]
        %v344 = vld [vmem:[%s331 + $0x30] sm:$0xff]
        %v345 = vld [vmem:[%s331 + $0x38] sm:$0xff]
        %v346 = vld [vmem:[%s331 + $0x40] sm:$0xff]
        %v347 = vld [vmem:[%s331 + $0x48] sm:$0xff]
        %v348 = vld [vmem:[%s331 + $0x50] sm:$0xff]
        %v349 = vld [vmem:[%s331 + $0x58] sm:$0xff]
        %v350 = vld [vmem:[%s331 + $0x60] sm:$0xff]
        %v351 = vld [vmem:[%s331 + $0x68] sm:$0xff]
        %v352 = vld [vmem:[%s331 + $0x70] sm:$0xff]
        %v353 = vld [vmem:[%s331 + $0x78] sm:$0xff]
        %v354 = vld [vmem:[%s331 + $0x80] sm:$0xff]
        %v355 = vld [vmem:[%s331 + $0x88] sm:$0xff]
        %v356 = vld [vmem:[%s331 + $0x90] sm:$0xff]
        %v357 = vld [vmem:[%s331 + $0x98] sm:$0xff]
        %v358 = vld [vmem:[%s331 + $0xa0] sm:$0xff]
        %v359 = vld [vmem:[%s331 + $0xa8] sm:$0xff]
        %v360 = vld [vmem:[%s331 + $0xb0] sm:$0xff]
        %v361 = vld [vmem:[%s331 + $0xb8] sm:$0xff]
        %v362 = vld [vmem:[%s331 + $0xc0] sm:$0xff]
        %v363 = vld [vmem:[%s331 + $0xc8] sm:$0xff]
        %v364 = vld [vmem:[%s331 + $0xd0] sm:$0xff]
        %v365 = vld [vmem:[%s331 + $0xd8] sm:$0xff]
        %v366 = vld [vmem:[%s331 + $0xe0] sm:$0xff]
        %v367 = vld [vmem:[%s331 + $0xe8] sm:$0xff]
        %v368 = vld [vmem:[%s331 + $0xf0] sm:$0xff]
        %v369 = vld [vmem:[%s331 + $0xf8] sm:$0xff]
        %v370 = vld [vmem:[%s2] sm:$0xff]
        %v371 = vld [vmem:[%s2 + $0x8] sm:$0xff]
        %v372 = vld [vmem:[%s2 + $0x10] sm:$0xf]
        %374 = vset.pattern.permute.xlu0 0
        %375 = vperm.xlu0 %374, %v370
        %v376 = vpop.permute.xlu0 %375
        %379 = vset.pattern.permute.xlu0 0
        %380 = vperm.xlu0 %379, %v371
        %v381 = vpop.permute.xlu0 %380
        %384 = vset.pattern.permute.xlu0 0
        %385 = vperm.xlu0 %384, %v372
        %v386 = vpop.permute.xlu0 %385
        %vm388 = vcmask 31744
        %v390 = vsel %vm388, %v335, 0
        %v393 = vsel %vm388, %v336, 0
        %v396 = vsel %vm388, %v337, 0
        %v399 = vsel %vm388, %v338, 0
        %v402 = vsel %vm388, %v339, 0
        %v405 = vsel %vm388, %v340, 0
        %v408 = vsel %vm388, %v341, 0
        %v411 = vsel %vm388, %v342, 0
        %v414 = vsel %vm388, %v343, 0
        %v417 = vsel %vm388, %v344, 0
        %v420 = vsel %vm388, %v345, 0
        %v423 = vsel %vm388, %v346, 0
        %v426 = vsel %vm388, %v347, 0
        %v429 = vsel %vm388, %v348, 0
        %v432 = vsel %vm388, %v349, 0
        %v435 = vsel %vm388, %v350, 0
        %v438 = vsel %vm388, %v351, 0
        %v441 = vsel %vm388, %v352, 0
        %v444 = vsel %vm388, %v353, 0
        %v447 = vsel %vm388, %v354, 0
        %v450 = vsel %vm388, %v355, 0
        %v453 = vsel %vm388, %v356, 0
        %v456 = vsel %vm388, %v357, 0
        %v459 = vsel %vm388, %v358, 0
        %v462 = vsel %vm388, %v359, 0
        %v465 = vsel %vm388, %v360, 0
        %v468 = vsel %vm388, %v361, 0
        %v471 = vsel %vm388, %v362, 0
        %v474 = vsel %vm388, %v363, 0
        %v477 = vsel %vm388, %v364, 0
        %v480 = vsel %vm388, %v365, 0
        %v483 = vsel %vm388, %v366, 0
        %v486 = vsel %vm388, %v367, 0
        %v489 = vsel %vm388, %v368, 0
        %v492 = vsel %vm388, %v369, 0
        %494 = vmatprep.subr.mxu0 0.0
        %v495 = vand.u32 %v399, 4294901760
        %496 = vmatpush1.xpose.msra.mxu0 %v495
        %497 = vmatprep.subr.mxu0 0.0
        %v498 = vand.u32 %v402, 4294901760
        %499 = vmatpush1.xpose.msra.mxu0 %v498
        %500 = vmatprep.subr.mxu0 0.0
        %v501 = vand.u32 %v405, 4294901760
        %502 = vmatpush1.xpose.msra.mxu0 %v501
        %503 = vmatprep.subr.mxu0 0.0
        %v504 = vand.u32 %v408, 4294901760
        %505 = vmatpush1.xpose.msra.mxu0 %v504
        %506 = vmatprep.subr.mxu0 0.0
        %v507 = vand.u32 %v411, 4294901760
        %508 = vmatpush1.xpose.msra.mxu0 %v507
        %509 = vmatprep.subr.mxu0 0.0
        %v510 = vand.u32 %v414, 4294901760
        %511 = vmatpush1.xpose.msra.mxu0 %v510
        %512 = vmatprep.subr.mxu0 0.0
        %v513 = vand.u32 %v417, 4294901760
        %514 = vmatpush1.xpose.msra.mxu0 %v513
        %515 = vmatprep.subr.mxu0 0.0
        %v516 = vand.u32 %v420, 4294901760
        %517 = vmatpush1.xpose.msra.mxu0 %v516
        %518 = vmatprep.subr.mxu0 0.0
        %v519 = vand.u32 %v423, 4294901760
        %520 = vmatpush1.xpose.msra.mxu0 %v519
        %521 = vmatprep.subr.mxu0 0.0
        %v522 = vand.u32 %v426, 4294901760
        %523 = vmatpush1.xpose.msra.mxu0 %v522
        %524 = vmatprep.subr.mxu0 0.0
        %v525 = vand.u32 %v429, 4294901760
        %526 = vmatpush1.xpose.msra.mxu0 %v525
        %527 = vmatprep.subr.mxu0 0.0
        %v528 = vand.u32 %v432, 4294901760
        %529 = vmatpush1.xpose.msra.mxu0 %v528
        %530 = vmatprep.subr.mxu0 0.0
        %v531 = vand.u32 %v435, 4294901760
        %532 = vmatpush1.xpose.msra.mxu0 %v531
        %533 = vmatprep.subr.mxu0 0.0
        %v534 = vand.u32 %v438, 4294901760
        %535 = vmatpush1.xpose.msra.mxu0 %v534
        %536 = vmatprep.subr.mxu0 0.0
        %v537 = vand.u32 %v441, 4294901760
        %538 = vmatpush1.xpose.msra.mxu0 %v537
        %539 = vmatprep.subr.mxu0 0.0
        %v540 = vand.u32 %v444, 4294901760
        %541 = vmatpush1.xpose.msra.mxu0 %v540
        %542 = vmatprep.subr.mxu0 0.0
        %v543 = vand.u32 %v447, 4294901760
        %544 = vmatpush1.xpose.msra.mxu0 %v543
        %545 = vmatprep.subr.mxu0 0.0
        %v546 = vand.u32 %v450, 4294901760
        %547 = vmatpush1.xpose.msra.mxu0 %v546
        %548 = vmatprep.subr.mxu0 0.0
        %v549 = vand.u32 %v453, 4294901760
        %550 = vmatpush1.xpose.msra.mxu0 %v549
        %551 = vmatprep.subr.mxu0 0.0
        %v552 = vand.u32 %v456, 4294901760
        %553 = vmatpush1.xpose.msra.mxu0 %v552
        %554 = vmatprep.subr.mxu0 0.0
        %v555 = vand.u32 %v459, 4294901760
        %556 = vmatpush1.xpose.msra.mxu0 %v555
        %557 = vmatprep.subr.mxu0 0.0
        %v558 = vand.u32 %v462, 4294901760
        %559 = vmatpush1.xpose.msra.mxu0 %v558
        %560 = vmatprep.subr.mxu0 0.0
        %v561 = vand.u32 %v465, 4294901760
        %562 = vmatpush1.xpose.msra.mxu0 %v561
        %563 = vmatprep.subr.mxu0 0.0
        %v564 = vand.u32 %v468, 4294901760
        %565 = vmatpush1.xpose.msra.mxu0 %v564
        %566 = vmatprep.subr.mxu0 0.0
        %v567 = vand.u32 %v471, 4294901760
        %568 = vmatpush1.xpose.msra.mxu0 %v567
        %569 = vmatprep.subr.mxu0 0.0
        %v570 = vand.u32 %v474, 4294901760
        %571 = vmatpush1.xpose.msra.mxu0 %v570
        %572 = vmatprep.subr.mxu0 0.0
        %v573 = vand.u32 %v477, 4294901760
        %574 = vmatpush1.xpose.msra.mxu0 %v573
        %575 = vmatprep.subr.mxu0 0.0
        %v576 = vand.u32 %v480, 4294901760
        %577 = vmatpush1.xpose.msra.mxu0 %v576
        %578 = vmatprep.subr.mxu0 0.0
        %v579 = vand.u32 %v483, 4294901760
        %580 = vmatpush1.xpose.msra.mxu0 %v579
        %581 = vmatprep.subr.mxu0 0.0
        %v582 = vand.u32 %v486, 4294901760
        %583 = vmatpush1.xpose.msra.mxu0 %v582
        %584 = vmatprep.subr.mxu0 0.0
        %v585 = vand.u32 %v489, 4294901760
        %586 = vmatpush1.xpose.msra.mxu0 %v585
        %587 = vmatprep.subr.mxu0 0.0
        %v588 = vand.u32 %v492, 4294901760
        %589 = vmatpush1.xpose.msra.mxu0 %v588
        %590 = vmatprep.mubr.f32.mxu0 0.0
        %v591 = vand.u32 %v390, 4294901760
        %v592 = vsub.f32 %v390, %v591
        %v593 = vand.u32 %v592, 4294901760
        %v594 = vsub.f32 %v592, %v593
        %v595 = vand.u32 %v594, 4294901760
        %596 = vmatmul.mubr.f32.gmra.mrb[0].mxu0 %v595
        %v597 = vpop.f32.mrb[0].mxu0
        %v598 = vadd.f32 %v376, %v597
        %v599 = vpop.f32.mrb[0].mxu0
        %v600 = vadd.f32 %v376, %v599
        %601 = vmatprep.mubr.f32.mxu0 0.0
        %v602 = vand.u32 %v393, 4294901760
        %v603 = vsub.f32 %v393, %v602
        %v604 = vand.u32 %v603, 4294901760
        %v605 = vsub.f32 %v603, %v604
        %v606 = vand.u32 %v605, 4294901760
        %607 = vmatmul.mubr.f32.gmra.mrb[0].mxu0 %v606
        %v608 = vpop.f32.mrb[0].mxu0
        %v609 = vadd.f32 %v381, %v608
        %v610 = vpop.f32.mrb[0].mxu0
        %v611 = vadd.f32 %v381, %v610
        %612 = vmatprep.mubr.f32.mxu0 0.0
        %v613 = vand.u32 %v396, 4294901760
        %v614 = vsub.f32 %v396, %v613
        %v615 = vand.u32 %v614, 4294901760
        %v616 = vsub.f32 %v614, %v615
        %v617 = vand.u32 %v616, 4294901760
        %618 = vmatmul.mubr.f32.gmra.mrb[0].mxu0 %v617
        %v619 = vpop.f32.mrb[0].mxu0
        %v620 = vadd.f32 %v386, %v619
        %v621 = vpop.f32.mrb[0].mxu0
        %v622 = vadd.f32 %v386, %v621
        %623 = vdwg.mxu0
        %624 = vmatprep.subr.mxu0 0.0
        %v625 = vand.u32 %v399, 4294901760
        %v626 = vsub.f32 %v399, %v625
        %v627 = vand.u32 %v626, 4294901760
        %v628 = vsub.f32 %v626, %v627
        %v629 = vand.u32 %v628, 4294901760
        %630 = vmatpush1.xpose.msra.mxu0 %v629
        %631 = vmatprep.subr.mxu0 0.0
        %v632 = vand.u32 %v402, 4294901760
        %v633 = vsub.f32 %v402, %v632
        %v634 = vand.u32 %v633, 4294901760
        %v635 = vsub.f32 %v633, %v634
        %v636 = vand.u32 %v635, 4294901760
        %637 = vmatpush1.xpose.msra.mxu0 %v636
        %638 = vmatprep.subr.mxu0 0.0
        %v639 = vand.u32 %v405, 4294901760
        %v640 = vsub.f32 %v405, %v639
        %v641 = vand.u32 %v640, 4294901760
        %v642 = vsub.f32 %v640, %v641
        %v643 = vand.u32 %v642, 4294901760
        %644 = vmatpush1.xpose.msra.mxu0 %v643
        %645 = vmatprep.subr.mxu0 0.0
        %v646 = vand.u32 %v408, 4294901760
        %v647 = vsub.f32 %v408, %v646
        %v648 = vand.u32 %v647, 4294901760
        %v649 = vsub.f32 %v647, %v648
        %v650 = vand.u32 %v649, 4294901760
        %651 = vmatpush1.xpose.msra.mxu0 %v650
        %652 = vmatprep.subr.mxu0 0.0
        %v653 = vand.u32 %v411, 4294901760
        %v654 = vsub.f32 %v411, %v653
        %v655 = vand.u32 %v654, 4294901760
        %v656 = vsub.f32 %v654, %v655
        %v657 = vand.u32 %v656, 4294901760
        %658 = vmatpush1.xpose.msra.mxu0 %v657
        %659 = vmatprep.subr.mxu0 0.0
        %v660 = vand.u32 %v414, 4294901760
        %v661 = vsub.f32 %v414, %v660
        %v662 = vand.u32 %v661, 4294901760
        %v663 = vsub.f32 %v661, %v662
        %v664 = vand.u32 %v663, 4294901760
        %665 = vmatpush1.xpose.msra.mxu0 %v664
        %666 = vmatprep.subr.mxu0 0.0
        %v667 = vand.u32 %v417, 4294901760
        %v668 = vsub.f32 %v417, %v667
        %v669 = vand.u32 %v668, 4294901760
        %v670 = vsub.f32 %v668, %v669
        %v671 = vand.u32 %v670, 4294901760
        %672 = vmatpush1.xpose.msra.mxu0 %v671
        %673 = vmatprep.subr.mxu0 0.0
        %v674 = vand.u32 %v420, 4294901760
        %v675 = vsub.f32 %v420, %v674
        %v676 = vand.u32 %v675, 4294901760
        %v677 = vsub.f32 %v675, %v676
        %v678 = vand.u32 %v677, 4294901760
        %679 = vmatpush1.xpose.msra.mxu0 %v678
        %680 = vmatprep.subr.mxu0 0.0
        %v681 = vand.u32 %v423, 4294901760
        %v682 = vsub.f32 %v423, %v681
        %v683 = vand.u32 %v682, 4294901760
        %v684 = vsub.f32 %v682, %v683
        %v685 = vand.u32 %v684, 4294901760
        %686 = vmatpush1.xpose.msra.mxu0 %v685
        %687 = vmatprep.subr.mxu0 0.0
        %v688 = vand.u32 %v426, 4294901760
        %v689 = vsub.f32 %v426, %v688
        %v690 = vand.u32 %v689, 4294901760
        %v691 = vsub.f32 %v689, %v690
        %v692 = vand.u32 %v691, 4294901760
        %693 = vmatpush1.xpose.msra.mxu0 %v692
        %694 = vmatprep.subr.mxu0 0.0
        %v695 = vand.u32 %v429, 4294901760
        %v696 = vsub.f32 %v429, %v695
        %v697 = vand.u32 %v696, 4294901760
        %v698 = vsub.f32 %v696, %v697
        %v699 = vand.u32 %v698, 4294901760
        %700 = vmatpush1.xpose.msra.mxu0 %v699
        %701 = vmatprep.subr.mxu0 0.0
        %v702 = vand.u32 %v432, 4294901760
        %v703 = vsub.f32 %v432, %v702
        %v704 = vand.u32 %v703, 4294901760
        %v705 = vsub.f32 %v703, %v704
        %v706 = vand.u32 %v705, 4294901760
        %707 = vmatpush1.xpose.msra.mxu0 %v706
        %708 = vmatprep.subr.mxu0 0.0
        %v709 = vand.u32 %v435, 4294901760
        %v710 = vsub.f32 %v435, %v709
        %v711 = vand.u32 %v710, 4294901760
        %v712 = vsub.f32 %v710, %v711
        %v713 = vand.u32 %v712, 4294901760
        %714 = vmatpush1.xpose.msra.mxu0 %v713
        %715 = vmatprep.subr.mxu0 0.0
        %v716 = vand.u32 %v438, 4294901760
        %v717 = vsub.f32 %v438, %v716
        %v718 = vand.u32 %v717, 4294901760
        %v719 = vsub.f32 %v717, %v718
        %v720 = vand.u32 %v719, 4294901760
        %721 = vmatpush1.xpose.msra.mxu0 %v720
        %722 = vmatprep.subr.mxu0 0.0
        %v723 = vand.u32 %v441, 4294901760
        %v724 = vsub.f32 %v441, %v723
        %v725 = vand.u32 %v724, 4294901760
        %v726 = vsub.f32 %v724, %v725
        %v727 = vand.u32 %v726, 4294901760
        %728 = vmatpush1.xpose.msra.mxu0 %v727
        %729 = vmatprep.subr.mxu0 0.0
        %v730 = vand.u32 %v444, 4294901760
        %v731 = vsub.f32 %v444, %v730
        %v732 = vand.u32 %v731, 4294901760
        %v733 = vsub.f32 %v731, %v732
        %v734 = vand.u32 %v733, 4294901760
        %735 = vmatpush1.xpose.msra.mxu0 %v734
        %736 = vmatprep.subr.mxu0 0.0
        %v737 = vand.u32 %v447, 4294901760
        %v738 = vsub.f32 %v447, %v737
        %v739 = vand.u32 %v738, 4294901760
        %v740 = vsub.f32 %v738, %v739
        %v741 = vand.u32 %v740, 4294901760
        %742 = vmatpush1.xpose.msra.mxu0 %v741
        %743 = vmatprep.subr.mxu0 0.0
        %v744 = vand.u32 %v450, 4294901760
        %v745 = vsub.f32 %v450, %v744
        %v746 = vand.u32 %v745, 4294901760
        %v747 = vsub.f32 %v745, %v746
        %v748 = vand.u32 %v747, 4294901760
        %749 = vmatpush1.xpose.msra.mxu0 %v748
        %750 = vmatprep.subr.mxu0 0.0
        %v751 = vand.u32 %v453, 4294901760
        %v752 = vsub.f32 %v453, %v751
        %v753 = vand.u32 %v752, 4294901760
        %v754 = vsub.f32 %v752, %v753
        %v755 = vand.u32 %v754, 4294901760
        %756 = vmatpush1.xpose.msra.mxu0 %v755
        %757 = vmatprep.subr.mxu0 0.0
        %v758 = vand.u32 %v456, 4294901760
        %v759 = vsub.f32 %v456, %v758
        %v760 = vand.u32 %v759, 4294901760
        %v761 = vsub.f32 %v759, %v760
        %v762 = vand.u32 %v761, 4294901760
        %763 = vmatpush1.xpose.msra.mxu0 %v762
        %764 = vmatprep.subr.mxu0 0.0
        %v765 = vand.u32 %v459, 4294901760
        %v766 = vsub.f32 %v459, %v765
        %v767 = vand.u32 %v766, 4294901760
        %v768 = vsub.f32 %v766, %v767
        %v769 = vand.u32 %v768, 4294901760
        %770 = vmatpush1.xpose.msra.mxu0 %v769
        %771 = vmatprep.subr.mxu0 0.0
        %v772 = vand.u32 %v462, 4294901760
        %v773 = vsub.f32 %v462, %v772
        %v774 = vand.u32 %v773, 4294901760
        %v775 = vsub.f32 %v773, %v774
        %v776 = vand.u32 %v775, 4294901760
        %777 = vmatpush1.xpose.msra.mxu0 %v776
        %778 = vmatprep.subr.mxu0 0.0
        %v779 = vand.u32 %v465, 4294901760
        %v780 = vsub.f32 %v465, %v779
        %v781 = vand.u32 %v780, 4294901760
        %v782 = vsub.f32 %v780, %v781
        %v783 = vand.u32 %v782, 4294901760
        %784 = vmatpush1.xpose.msra.mxu0 %v783
        %785 = vmatprep.subr.mxu0 0.0
        %v786 = vand.u32 %v468, 4294901760
        %v787 = vsub.f32 %v468, %v786
        %v788 = vand.u32 %v787, 4294901760
        %v789 = vsub.f32 %v787, %v788
        %v790 = vand.u32 %v789, 4294901760
        %791 = vmatpush1.xpose.msra.mxu0 %v790
        %792 = vmatprep.subr.mxu0 0.0
        %v793 = vand.u32 %v471, 4294901760
        %v794 = vsub.f32 %v471, %v793
        %v795 = vand.u32 %v794, 4294901760
        %v796 = vsub.f32 %v794, %v795
        %v797 = vand.u32 %v796, 4294901760
        %798 = vmatpush1.xpose.msra.mxu0 %v797
        %799 = vmatprep.subr.mxu0 0.0
        %v800 = vand.u32 %v474, 4294901760
        %v801 = vsub.f32 %v474, %v800
        %v802 = vand.u32 %v801, 4294901760
        %v803 = vsub.f32 %v801, %v802
        %v804 = vand.u32 %v803, 4294901760
        %805 = vmatpush1.xpose.msra.mxu0 %v804
        %806 = vmatprep.subr.mxu0 0.0
        %v807 = vand.u32 %v477, 4294901760
        %v808 = vsub.f32 %v477, %v807
        %v809 = vand.u32 %v808, 4294901760
        %v810 = vsub.f32 %v808, %v809
        %v811 = vand.u32 %v810, 4294901760
        %812 = vmatpush1.xpose.msra.mxu0 %v811
        %813 = vmatprep.subr.mxu0 0.0
        %v814 = vand.u32 %v480, 4294901760
        %v815 = vsub.f32 %v480, %v814
        %v816 = vand.u32 %v815, 4294901760
        %v817 = vsub.f32 %v815, %v816
        %v818 = vand.u32 %v817, 4294901760
        %819 = vmatpush1.xpose.msra.mxu0 %v818
        %820 = vmatprep.subr.mxu0 0.0
        %v821 = vand.u32 %v483, 4294901760
        %v822 = vsub.f32 %v483, %v821
        %v823 = vand.u32 %v822, 4294901760
        %v824 = vsub.f32 %v822, %v823
        %v825 = vand.u32 %v824, 4294901760
        %826 = vmatpush1.xpose.msra.mxu0 %v825
        %827 = vmatprep.subr.mxu0 0.0
        %v828 = vand.u32 %v486, 4294901760
        %v829 = vsub.f32 %v486, %v828
        %v830 = vand.u32 %v829, 4294901760
        %v831 = vsub.f32 %v829, %v830
        %v832 = vand.u32 %v831, 4294901760
        %833 = vmatpush1.xpose.msra.mxu0 %v832
        %834 = vmatprep.subr.mxu0 0.0
        %v835 = vand.u32 %v489, 4294901760
        %v836 = vsub.f32 %v489, %v835
        %v837 = vand.u32 %v836, 4294901760
        %v838 = vsub.f32 %v836, %v837
        %v839 = vand.u32 %v838, 4294901760
        %840 = vmatpush1.xpose.msra.mxu0 %v839
        %841 = vmatprep.subr.mxu0 0.0
        %v842 = vand.u32 %v492, 4294901760
        %v843 = vsub.f32 %v492, %v842
        %v844 = vand.u32 %v843, 4294901760
        %v845 = vsub.f32 %v843, %v844
        %v846 = vand.u32 %v845, 4294901760
        %847 = vmatpush1.xpose.msra.mxu0 %v846
        %848 = vmatprep.mubr.f32.mxu0 0.0
        %v849 = vand.u32 %v390, 4294901760
        %850 = vmatmul.mubr.f32.gmra.mrb[0].mxu0 %v849
        %v851 = vpop.f32.mrb[0].mxu0
        %v852 = vadd.f32 %v598, %v851
        %v853 = vpop.f32.mrb[0].mxu0
        %v854 = vadd.f32 %v600, %v853
        %855 = vmatprep.mubr.f32.mxu0 0.0
        %v856 = vand.u32 %v393, 4294901760
        %857 = vmatmul.mubr.f32.gmra.mrb[0].mxu0 %v856
        %v858 = vpop.f32.mrb[0].mxu0
        %v859 = vadd.f32 %v609, %v858
        %v860 = vpop.f32.mrb[0].mxu0
        %v861 = vadd.f32 %v611, %v860
        %862 = vmatprep.mubr.f32.mxu0 0.0
        %v863 = vand.u32 %v396, 4294901760
        %864 = vmatmul.mubr.f32.gmra.mrb[0].mxu0 %v863
        %v865 = vpop.f32.mrb[0].mxu0
        %v866 = vadd.f32 %v620, %v865
        %v867 = vpop.f32.mrb[0].mxu0
        %v868 = vadd.f32 %v622, %v867
        %869 = vdwg.mxu0
        %870 = vmatprep.subr.mxu0 0.0
        %v871 = vand.u32 %v399, 4294901760
        %v872 = vsub.f32 %v399, %v871
        %873 = vmatpush1.xpose.msra.mxu0 %v872
        %874 = vmatprep.subr.mxu0 0.0
        %v875 = vand.u32 %v402, 4294901760
        %v876 = vsub.f32 %v402, %v875
        %877 = vmatpush1.xpose.msra.mxu0 %v876
        %878 = vmatprep.subr.mxu0 0.0
        %v879 = vand.u32 %v405, 4294901760
        %v880 = vsub.f32 %v405, %v879
        %881 = vmatpush1.xpose.msra.mxu0 %v880
        %882 = vmatprep.subr.mxu0 0.0
        %v883 = vand.u32 %v408, 4294901760
        %v884 = vsub.f32 %v408, %v883
        %885 = vmatpush1.xpose.msra.mxu0 %v884
        %886 = vmatprep.subr.mxu0 0.0
        %v887 = vand.u32 %v411, 4294901760
        %v888 = vsub.f32 %v411, %v887
        %889 = vmatpush1.xpose.msra.mxu0 %v888
        %890 = vmatprep.subr.mxu0 0.0
        %v891 = vand.u32 %v414, 4294901760
        %v892 = vsub.f32 %v414, %v891
        %893 = vmatpush1.xpose.msra.mxu0 %v892
        %894 = vmatprep.subr.mxu0 0.0
        %v895 = vand.u32 %v417, 4294901760
        %v896 = vsub.f32 %v417, %v895
        %897 = vmatpush1.xpose.msra.mxu0 %v896
        %898 = vmatprep.subr.mxu0 0.0
        %v899 = vand.u32 %v420, 4294901760
        %v900 = vsub.f32 %v420, %v899
        %901 = vmatpush1.xpose.msra.mxu0 %v900
        %902 = vmatprep.subr.mxu0 0.0
        %v903 = vand.u32 %v423, 4294901760
        %v904 = vsub.f32 %v423, %v903
        %905 = vmatpush1.xpose.msra.mxu0 %v904
        %906 = vmatprep.subr.mxu0 0.0
        %v907 = vand.u32 %v426, 4294901760
        %v908 = vsub.f32 %v426, %v907
        %909 = vmatpush1.xpose.msra.mxu0 %v908
        %910 = vmatprep.subr.mxu0 0.0
        %v911 = vand.u32 %v429, 4294901760
        %v912 = vsub.f32 %v429, %v911
        %913 = vmatpush1.xpose.msra.mxu0 %v912
        %914 = vmatprep.subr.mxu0 0.0
        %v915 = vand.u32 %v432, 4294901760
        %v916 = vsub.f32 %v432, %v915
        %917 = vmatpush1.xpose.msra.mxu0 %v916
        %918 = vmatprep.subr.mxu0 0.0
        %v919 = vand.u32 %v435, 4294901760
        %v920 = vsub.f32 %v435, %v919
        %921 = vmatpush1.xpose.msra.mxu0 %v920
        %922 = vmatprep.subr.mxu0 0.0
        %v923 = vand.u32 %v438, 4294901760
        %v924 = vsub.f32 %v438, %v923
        %925 = vmatpush1.xpose.msra.mxu0 %v924
        %926 = vmatprep.subr.mxu0 0.0
        %v927 = vand.u32 %v441, 4294901760
        %v928 = vsub.f32 %v441, %v927
        %929 = vmatpush1.xpose.msra.mxu0 %v928
        %930 = vmatprep.subr.mxu0 0.0
        %v931 = vand.u32 %v444, 4294901760
        %v932 = vsub.f32 %v444, %v931
        %933 = vmatpush1.xpose.msra.mxu0 %v932
        %934 = vmatprep.subr.mxu0 0.0
        %v935 = vand.u32 %v447, 4294901760
        %v936 = vsub.f32 %v447, %v935
        %937 = vmatpush1.xpose.msra.mxu0 %v936
        %938 = vmatprep.subr.mxu0 0.0
        %v939 = vand.u32 %v450, 4294901760
        %v940 = vsub.f32 %v450, %v939
        %941 = vmatpush1.xpose.msra.mxu0 %v940
        %942 = vmatprep.subr.mxu0 0.0
        %v943 = vand.u32 %v453, 4294901760
        %v944 = vsub.f32 %v453, %v943
        %945 = vmatpush1.xpose.msra.mxu0 %v944
        %946 = vmatprep.subr.mxu0 0.0
        %v947 = vand.u32 %v456, 4294901760
        %v948 = vsub.f32 %v456, %v947
        %949 = vmatpush1.xpose.msra.mxu0 %v948
        %950 = vmatprep.subr.mxu0 0.0
        %v951 = vand.u32 %v459, 4294901760
        %v952 = vsub.f32 %v459, %v951
        %953 = vmatpush1.xpose.msra.mxu0 %v952
        %954 = vmatprep.subr.mxu0 0.0
        %v955 = vand.u32 %v462, 4294901760
        %v956 = vsub.f32 %v462, %v955
        %957 = vmatpush1.xpose.msra.mxu0 %v956
        %958 = vmatprep.subr.mxu0 0.0
        %v959 = vand.u32 %v465, 4294901760
        %v960 = vsub.f32 %v465, %v959
        %961 = vmatpush1.xpose.msra.mxu0 %v960
        %962 = vmatprep.subr.mxu0 0.0
        %v963 = vand.u32 %v468, 4294901760
        %v964 = vsub.f32 %v468, %v963
        %965 = vmatpush1.xpose.msra.mxu0 %v964
        %966 = vmatprep.subr.mxu0 0.0
        %v967 = vand.u32 %v471, 4294901760
        %v968 = vsub.f32 %v471, %v967
        %969 = vmatpush1.xpose.msra.mxu0 %v968
        %970 = vmatprep.subr.mxu0 0.0
        %v971 = vand.u32 %v474, 4294901760
        %v972 = vsub.f32 %v474, %v971
        %973 = vmatpush1.xpose.msra.mxu0 %v972
        %974 = vmatprep.subr.mxu0 0.0
        %v975 = vand.u32 %v477, 4294901760
        %v976 = vsub.f32 %v477, %v975
        %977 = vmatpush1.xpose.msra.mxu0 %v976
        %978 = vmatprep.subr.mxu0 0.0
        %v979 = vand.u32 %v480, 4294901760
        %v980 = vsub.f32 %v480, %v979
        %981 = vmatpush1.xpose.msra.mxu0 %v980
        %982 = vmatprep.subr.mxu0 0.0
        %v983 = vand.u32 %v483, 4294901760
        %v984 = vsub.f32 %v483, %v983
        %985 = vmatpush1.xpose.msra.mxu0 %v984
        %986 = vmatprep.subr.mxu0 0.0
        %v987 = vand.u32 %v486, 4294901760
        %v988 = vsub.f32 %v486, %v987
        %989 = vmatpush1.xpose.msra.mxu0 %v988
        %990 = vmatprep.subr.mxu0 0.0
        %v991 = vand.u32 %v489, 4294901760
        %v992 = vsub.f32 %v489, %v991
        %993 = vmatpush1.xpose.msra.mxu0 %v992
        %994 = vmatprep.subr.mxu0 0.0
        %v995 = vand.u32 %v492, 4294901760
        %v996 = vsub.f32 %v492, %v995
        %997 = vmatpush1.xpose.msra.mxu0 %v996
        %998 = vmatprep.mubr.f32.mxu0 0.0
        %v999 = vand.u32 %v390, 4294901760
        %v1000 = vsub.f32 %v390, %v999
        %1001 = vmatmul.mubr.f32.gmra.mrb[0].mxu0 %v1000
        %v1002 = vpop.f32.mrb[0].mxu0
        %v1003 = vadd.f32 %v852, %v1002
        %v1004 = vpop.f32.mrb[0].mxu0
        %v1005 = vadd.f32 %v854, %v1004
        %1006 = vmatprep.mubr.f32.mxu0 0.0
        %v1007 = vand.u32 %v393, 4294901760
        %v1008 = vsub.f32 %v393, %v1007
        %1009 = vmatmul.mubr.f32.gmra.mrb[0].mxu0 %v1008
        %v1010 = vpop.f32.mrb[0].mxu0
        %v1011 = vadd.f32 %v859, %v1010
        %v1012 = vpop.f32.mrb[0].mxu0
        %v1013 = vadd.f32 %v861, %v1012
        %1014 = vmatprep.mubr.f32.mxu0 0.0
        %v1015 = vand.u32 %v396, 4294901760
        %v1016 = vsub.f32 %v396, %v1015
        %1017 = vmatmul.mubr.f32.gmra.mrb[0].mxu0 %v1016
        %v1018 = vpop.f32.mrb[0].mxu0
        %v1019 = vadd.f32 %v866, %v1018
        %v1020 = vpop.f32.mrb[0].mxu0
        %v1021 = vadd.f32 %v868, %v1020
        %1022 = vdwg.mxu0
        %1023 = vmatprep.subr.mxu0 0.0
        %v1024 = vand.u32 %v399, 4294901760
        %1025 = vmatpush1.xpose.msra.mxu0 %v1024
        %1026 = vmatprep.subr.mxu0 0.0
        %v1027 = vand.u32 %v402, 4294901760
        %1028 = vmatpush1.xpose.msra.mxu0 %v1027
        %1029 = vmatprep.subr.mxu0 0.0
        %v1030 = vand.u32 %v405, 4294901760
        %1031 = vmatpush1.xpose.msra.mxu0 %v1030
        %1032 = vmatprep.subr.mxu0 0.0
        %v1033 = vand.u32 %v408, 4294901760
        %1034 = vmatpush1.xpose.msra.mxu0 %v1033
        %1035 = vmatprep.subr.mxu0 0.0
        %v1036 = vand.u32 %v411, 4294901760
        %1037 = vmatpush1.xpose.msra.mxu0 %v1036
        %1038 = vmatprep.subr.mxu0 0.0
        %v1039 = vand.u32 %v414, 4294901760
        %1040 = vmatpush1.xpose.msra.mxu0 %v1039
        %1041 = vmatprep.subr.mxu0 0.0
        %v1042 = vand.u32 %v417, 4294901760
        %1043 = vmatpush1.xpose.msra.mxu0 %v1042
        %1044 = vmatprep.subr.mxu0 0.0
        %v1045 = vand.u32 %v420, 4294901760
        %1046 = vmatpush1.xpose.msra.mxu0 %v1045
        %1047 = vmatprep.subr.mxu0 0.0
        %v1048 = vand.u32 %v423, 4294901760
        %1049 = vmatpush1.xpose.msra.mxu0 %v1048
        %1050 = vmatprep.subr.mxu0 0.0
        %v1051 = vand.u32 %v426, 4294901760
        %1052 = vmatpush1.xpose.msra.mxu0 %v1051
        %1053 = vmatprep.subr.mxu0 0.0
        %v1054 = vand.u32 %v429, 4294901760
        %1055 = vmatpush1.xpose.msra.mxu0 %v1054
        %1056 = vmatprep.subr.mxu0 0.0
        %v1057 = vand.u32 %v432, 4294901760
        %1058 = vmatpush1.xpose.msra.mxu0 %v1057
        %1059 = vmatprep.subr.mxu0 0.0
        %v1060 = vand.u32 %v435, 4294901760
        %1061 = vmatpush1.xpose.msra.mxu0 %v1060
        %1062 = vmatprep.subr.mxu0 0.0
        %v1063 = vand.u32 %v438, 4294901760
        %1064 = vmatpush1.xpose.msra.mxu0 %v1063
        %1065 = vmatprep.subr.mxu0 0.0
        %v1066 = vand.u32 %v441, 4294901760
        %1067 = vmatpush1.xpose.msra.mxu0 %v1066
        %1068 = vmatprep.subr.mxu0 0.0
        %v1069 = vand.u32 %v444, 4294901760
        %1070 = vmatpush1.xpose.msra.mxu0 %v1069
        %1071 = vmatprep.subr.mxu0 0.0
        %v1072 = vand.u32 %v447, 4294901760
        %1073 = vmatpush1.xpose.msra.mxu0 %v1072
        %1074 = vmatprep.subr.mxu0 0.0
        %v1075 = vand.u32 %v450, 4294901760
        %1076 = vmatpush1.xpose.msra.mxu0 %v1075
        %1077 = vmatprep.subr.mxu0 0.0
        %v1078 = vand.u32 %v453, 4294901760
        %1079 = vmatpush1.xpose.msra.mxu0 %v1078
        %1080 = vmatprep.subr.mxu0 0.0
        %v1081 = vand.u32 %v456, 4294901760
        %1082 = vmatpush1.xpose.msra.mxu0 %v1081
        %1083 = vmatprep.subr.mxu0 0.0
        %v1084 = vand.u32 %v459, 4294901760
        %1085 = vmatpush1.xpose.msra.mxu0 %v1084
        %1086 = vmatprep.subr.mxu0 0.0
        %v1087 = vand.u32 %v462, 4294901760
        %1088 = vmatpush1.xpose.msra.mxu0 %v1087
        %1089 = vmatprep.subr.mxu0 0.0
        %v1090 = vand.u32 %v465, 4294901760
        %1091 = vmatpush1.xpose.msra.mxu0 %v1090
        %1092 = vmatprep.subr.mxu0 0.0
        %v1093 = vand.u32 %v468, 4294901760
        %1094 = vmatpush1.xpose.msra.mxu0 %v1093
        %1095 = vmatprep.subr.mxu0 0.0
        %v1096 = vand.u32 %v471, 4294901760
        %1097 = vmatpush1.xpose.msra.mxu0 %v1096
        %1098 = vmatprep.subr.mxu0 0.0
        %v1099 = vand.u32 %v474, 4294901760
        %1100 = vmatpush1.xpose.msra.mxu0 %v1099
        %1101 = vmatprep.subr.mxu0 0.0
        %v1102 = vand.u32 %v477, 4294901760
        %1103 = vmatpush1.xpose.msra.mxu0 %v1102
        %1104 = vmatprep.subr.mxu0 0.0
        %v1105 = vand.u32 %v480, 4294901760
        %1106 = vmatpush1.xpose.msra.mxu0 %v1105
        %1107 = vmatprep.subr.mxu0 0.0
        %v1108 = vand.u32 %v483, 4294901760
        %1109 = vmatpush1.xpose.msra.mxu0 %v1108
        %1110 = vmatprep.subr.mxu0 0.0
        %v1111 = vand.u32 %v486, 4294901760
        %1112 = vmatpush1.xpose.msra.mxu0 %v1111
        %1113 = vmatprep.subr.mxu0 0.0
        %v1114 = vand.u32 %v489, 4294901760
        %1115 = vmatpush1.xpose.msra.mxu0 %v1114
        %1116 = vmatprep.subr.mxu0 0.0
        %v1117 = vand.u32 %v492, 4294901760
        %1118 = vmatpush1.xpose.msra.mxu0 %v1117
        %1119 = vmatprep.mubr.f32.mxu0 0.0
        %v1120 = vand.u32 %v390, 4294901760
        %v1121 = vsub.f32 %v390, %v1120
        %v1122 = vand.u32 %v1121, 4294901760
        %1123 = vmatmul.mubr.f32.gmra.mrb[0].mxu0 %v1122
        %v1124 = vpop.f32.mrb[0].mxu0
        %v1125 = vadd.f32 %v1003, %v1124
        %v1126 = vpop.f32.mrb[0].mxu0
        %v1127 = vadd.f32 %v1005, %v1126
        %1128 = vmatprep.mubr.f32.mxu0 0.0
        %v1129 = vand.u32 %v393, 4294901760
        %v1130 = vsub.f32 %v393, %v1129
        %v1131 = vand.u32 %v1130, 4294901760
        %1132 = vmatmul.mubr.f32.gmra.mrb[0].mxu0 %v1131
        %v1133 = vpop.f32.mrb[0].mxu0
        %v1134 = vadd.f32 %v1011, %v1133
        %v1135 = vpop.f32.mrb[0].mxu0
        %v1136 = vadd.f32 %v1013, %v1135
        %1137 = vmatprep.mubr.f32.mxu0 0.0
        %v1138 = vand.u32 %v396, 4294901760
        %v1139 = vsub.f32 %v396, %v1138
        %v1140 = vand.u32 %v1139, 4294901760
        %1141 = vmatmul.mubr.f32.gmra.mrb[0].mxu0 %v1140
        %v1142 = vpop.f32.mrb[0].mxu0
        %v1143 = vadd.f32 %v1019, %v1142
        %v1144 = vpop.f32.mrb[0].mxu0
        %v1145 = vadd.f32 %v1021, %v1144
        %1146 = vdwg.mxu0
        %1147 = vmatprep.subr.mxu0 0.0
        %v1148 = vand.u32 %v399, 4294901760
        %v1149 = vsub.f32 %v399, %v1148
        %v1150 = vand.u32 %v1149, 4294901760
        %1151 = vmatpush1.xpose.msra.mxu0 %v1150
        %1152 = vmatprep.subr.mxu0 0.0
        %v1153 = vand.u32 %v402, 4294901760
        %v1154 = vsub.f32 %v402, %v1153
        %v1155 = vand.u32 %v1154, 4294901760
        %1156 = vmatpush1.xpose.msra.mxu0 %v1155
        %1157 = vmatprep.subr.mxu0 0.0
        %v1158 = vand.u32 %v405, 4294901760
        %v1159 = vsub.f32 %v405, %v1158
        %v1160 = vand.u32 %v1159, 4294901760
        %1161 = vmatpush1.xpose.msra.mxu0 %v1160
        %1162 = vmatprep.subr.mxu0 0.0
        %v1163 = vand.u32 %v408, 4294901760
        %v1164 = vsub.f32 %v408, %v1163
        %v1165 = vand.u32 %v1164, 4294901760
        %1166 = vmatpush1.xpose.msra.mxu0 %v1165
        %1167 = vmatprep.subr.mxu0 0.0
        %v1168 = vand.u32 %v411, 4294901760
        %v1169 = vsub.f32 %v411, %v1168
        %v1170 = vand.u32 %v1169, 4294901760
        %1171 = vmatpush1.xpose.msra.mxu0 %v1170
        %1172 = vmatprep.subr.mxu0 0.0
        %v1173 = vand.u32 %v414, 4294901760
        %v1174 = vsub.f32 %v414, %v1173
        %v1175 = vand.u32 %v1174, 4294901760
        %1176 = vmatpush1.xpose.msra.mxu0 %v1175
        %1177 = vmatprep.subr.mxu0 0.0
        %v1178 = vand.u32 %v417, 4294901760
        %v1179 = vsub.f32 %v417, %v1178
        %v1180 = vand.u32 %v1179, 4294901760
        %1181 = vmatpush1.xpose.msra.mxu0 %v1180
        %1182 = vmatprep.subr.mxu0 0.0
        %v1183 = vand.u32 %v420, 4294901760
        %v1184 = vsub.f32 %v420, %v1183
        %v1185 = vand.u32 %v1184, 4294901760
        %1186 = vmatpush1.xpose.msra.mxu0 %v1185
        %1187 = vmatprep.subr.mxu0 0.0
        %v1188 = vand.u32 %v423, 4294901760
        %v1189 = vsub.f32 %v423, %v1188
        %v1190 = vand.u32 %v1189, 4294901760
        %1191 = vmatpush1.xpose.msra.mxu0 %v1190
        %1192 = vmatprep.subr.mxu0 0.0
        %v1193 = vand.u32 %v426, 4294901760
        %v1194 = vsub.f32 %v426, %v1193
        %v1195 = vand.u32 %v1194, 4294901760
        %1196 = vmatpush1.xpose.msra.mxu0 %v1195
        %1197 = vmatprep.subr.mxu0 0.0
        %v1198 = vand.u32 %v429, 4294901760
        %v1199 = vsub.f32 %v429, %v1198
        %v1200 = vand.u32 %v1199, 4294901760
        %1201 = vmatpush1.xpose.msra.mxu0 %v1200
        %1202 = vmatprep.subr.mxu0 0.0
        %v1203 = vand.u32 %v432, 4294901760
        %v1204 = vsub.f32 %v432, %v1203
        %v1205 = vand.u32 %v1204, 4294901760
        %1206 = vmatpush1.xpose.msra.mxu0 %v1205
        %1207 = vmatprep.subr.mxu0 0.0
        %v1208 = vand.u32 %v435, 4294901760
        %v1209 = vsub.f32 %v435, %v1208
        %v1210 = vand.u32 %v1209, 4294901760
        %1211 = vmatpush1.xpose.msra.mxu0 %v1210
        %1212 = vmatprep.subr.mxu0 0.0
        %v1213 = vand.u32 %v438, 4294901760
        %v1214 = vsub.f32 %v438, %v1213
        %v1215 = vand.u32 %v1214, 4294901760
        %1216 = vmatpush1.xpose.msra.mxu0 %v1215
        %1217 = vmatprep.subr.mxu0 0.0
        %v1218 = vand.u32 %v441, 4294901760
        %v1219 = vsub.f32 %v441, %v1218
        %v1220 = vand.u32 %v1219, 4294901760
        %1221 = vmatpush1.xpose.msra.mxu0 %v1220
        %1222 = vmatprep.subr.mxu0 0.0
        %v1223 = vand.u32 %v444, 4294901760
        %v1224 = vsub.f32 %v444, %v1223
        %v1225 = vand.u32 %v1224, 4294901760
        %1226 = vmatpush1.xpose.msra.mxu0 %v1225
        %1227 = vmatprep.subr.mxu0 0.0
        %v1228 = vand.u32 %v447, 4294901760
        %v1229 = vsub.f32 %v447, %v1228
        %v1230 = vand.u32 %v1229, 4294901760
        %1231 = vmatpush1.xpose.msra.mxu0 %v1230
        %1232 = vmatprep.subr.mxu0 0.0
        %v1233 = vand.u32 %v450, 4294901760
        %v1234 = vsub.f32 %v450, %v1233
        %v1235 = vand.u32 %v1234, 4294901760
        %1236 = vmatpush1.xpose.msra.mxu0 %v1235
        %1237 = vmatprep.subr.mxu0 0.0
        %v1238 = vand.u32 %v453, 4294901760
        %v1239 = vsub.f32 %v453, %v1238
        %v1240 = vand.u32 %v1239, 4294901760
        %1241 = vmatpush1.xpose.msra.mxu0 %v1240
        %1242 = vmatprep.subr.mxu0 0.0
        %v1243 = vand.u32 %v456, 4294901760
        %v1244 = vsub.f32 %v456, %v1243
        %v1245 = vand.u32 %v1244, 4294901760
        %1246 = vmatpush1.xpose.msra.mxu0 %v1245
        %1247 = vmatprep.subr.mxu0 0.0
        %v1248 = vand.u32 %v459, 4294901760
        %v1249 = vsub.f32 %v459, %v1248
        %v1250 = vand.u32 %v1249, 4294901760
        %1251 = vmatpush1.xpose.msra.mxu0 %v1250
        %1252 = vmatprep.subr.mxu0 0.0
        %v1253 = vand.u32 %v462, 4294901760
        %v1254 = vsub.f32 %v462, %v1253
        %v1255 = vand.u32 %v1254, 4294901760
        %1256 = vmatpush1.xpose.msra.mxu0 %v1255
        %1257 = vmatprep.subr.mxu0 0.0
        %v1258 = vand.u32 %v465, 4294901760
        %v1259 = vsub.f32 %v465, %v1258
        %v1260 = vand.u32 %v1259, 4294901760
        %1261 = vmatpush1.xpose.msra.mxu0 %v1260
        %1262 = vmatprep.subr.mxu0 0.0
        %v1263 = vand.u32 %v468, 4294901760
        %v1264 = vsub.f32 %v468, %v1263
        %v1265 = vand.u32 %v1264, 4294901760
        %1266 = vmatpush1.xpose.msra.mxu0 %v1265
        %1267 = vmatprep.subr.mxu0 0.0
        %v1268 = vand.u32 %v471, 4294901760
        %v1269 = vsub.f32 %v471, %v1268
        %v1270 = vand.u32 %v1269, 4294901760
        %1271 = vmatpush1.xpose.msra.mxu0 %v1270
        %1272 = vmatprep.subr.mxu0 0.0
        %v1273 = vand.u32 %v474, 4294901760
        %v1274 = vsub.f32 %v474, %v1273
        %v1275 = vand.u32 %v1274, 4294901760
        %1276 = vmatpush1.xpose.msra.mxu0 %v1275
        %1277 = vmatprep.subr.mxu0 0.0
        %v1278 = vand.u32 %v477, 4294901760
        %v1279 = vsub.f32 %v477, %v1278
        %v1280 = vand.u32 %v1279, 4294901760
        %1281 = vmatpush1.xpose.msra.mxu0 %v1280
        %1282 = vmatprep.subr.mxu0 0.0
        %v1283 = vand.u32 %v480, 4294901760
        %v1284 = vsub.f32 %v480, %v1283
        %v1285 = vand.u32 %v1284, 4294901760
        %1286 = vmatpush1.xpose.msra.mxu0 %v1285
        %1287 = vmatprep.subr.mxu0 0.0
        %v1288 = vand.u32 %v483, 4294901760
        %v1289 = vsub.f32 %v483, %v1288
        %v1290 = vand.u32 %v1289, 4294901760
        %1291 = vmatpush1.xpose.msra.mxu0 %v1290
        %1292 = vmatprep.subr.mxu0 0.0
        %v1293 = vand.u32 %v486, 4294901760
        %v1294 = vsub.f32 %v486, %v1293
        %v1295 = vand.u32 %v1294, 4294901760
        %1296 = vmatpush1.xpose.msra.mxu0 %v1295
        %1297 = vmatprep.subr.mxu0 0.0
        %v1298 = vand.u32 %v489, 4294901760
        %v1299 = vsub.f32 %v489, %v1298
        %v1300 = vand.u32 %v1299, 4294901760
        %1301 = vmatpush1.xpose.msra.mxu0 %v1300
        %1302 = vmatprep.subr.mxu0 0.0
        %v1303 = vand.u32 %v492, 4294901760
        %v1304 = vsub.f32 %v492, %v1303
        %v1305 = vand.u32 %v1304, 4294901760
        %1306 = vmatpush1.xpose.msra.mxu0 %v1305
        %1307 = vmatprep.mubr.f32.mxu0 0.0
        %v1308 = vand.u32 %v390, 4294901760
        %1309 = vmatmul.mubr.f32.gmra.mrb[0].mxu0 %v1308
        %v1310 = vpop.f32.mrb[0].mxu0
        %v1311 = vadd.f32 %v1125, %v1310
        %v1312 = vpop.f32.mrb[0].mxu0
        %v1313 = vadd.f32 %v1127, %v1312
        %1314 = vmatprep.mubr.f32.mxu0 0.0
        %v1315 = vand.u32 %v393, 4294901760
        %1316 = vmatmul.mubr.f32.gmra.mrb[0].mxu0 %v1315
        %v1317 = vpop.f32.mrb[0].mxu0
        %v1318 = vadd.f32 %v1134, %v1317
        %v1319 = vpop.f32.mrb[0].mxu0
        %v1320 = vadd.f32 %v1136, %v1319
        %1321 = vmatprep.mubr.f32.mxu0 0.0
        %v1322 = vand.u32 %v396, 4294901760
        %1323 = vmatmul.mubr.f32.gmra.mrb[0].mxu0 %v1322
        %v1324 = vpop.f32.mrb[0].mxu0
        %v1325 = vadd.f32 %v1143, %v1324
        %v1326 = vpop.f32.mrb[0].mxu0
        %v1327 = vadd.f32 %v1145, %v1326
        %1328 = vdwg.mxu0
        %1329 = vmatprep.subr.mxu0 0.0
        %v1330 = vand.u32 %v399, 4294901760
        %1331 = vmatpush1.xpose.msra.mxu0 %v1330
        %1332 = vmatprep.subr.mxu0 0.0
        %v1333 = vand.u32 %v402, 4294901760
        %1334 = vmatpush1.xpose.msra.mxu0 %v1333
        %1335 = vmatprep.subr.mxu0 0.0
        %v1336 = vand.u32 %v405, 4294901760
        %1337 = vmatpush1.xpose.msra.mxu0 %v1336
        %1338 = vmatprep.subr.mxu0 0.0
        %v1339 = vand.u32 %v408, 4294901760
        %1340 = vmatpush1.xpose.msra.mxu0 %v1339
        %1341 = vmatprep.subr.mxu0 0.0
        %v1342 = vand.u32 %v411, 4294901760
        %1343 = vmatpush1.xpose.msra.mxu0 %v1342
        %1344 = vmatprep.subr.mxu0 0.0
        %v1345 = vand.u32 %v414, 4294901760
        %1346 = vmatpush1.xpose.msra.mxu0 %v1345
        %1347 = vmatprep.subr.mxu0 0.0
        %v1348 = vand.u32 %v417, 4294901760
        %1349 = vmatpush1.xpose.msra.mxu0 %v1348
        %1350 = vmatprep.subr.mxu0 0.0
        %v1351 = vand.u32 %v420, 4294901760
        %1352 = vmatpush1.xpose.msra.mxu0 %v1351
        %1353 = vmatprep.subr.mxu0 0.0
        %v1354 = vand.u32 %v423, 4294901760
        %1355 = vmatpush1.xpose.msra.mxu0 %v1354
        %1356 = vmatprep.subr.mxu0 0.0
        %v1357 = vand.u32 %v426, 4294901760
        %1358 = vmatpush1.xpose.msra.mxu0 %v1357
        %1359 = vmatprep.subr.mxu0 0.0
        %v1360 = vand.u32 %v429, 4294901760
        %1361 = vmatpush1.xpose.msra.mxu0 %v1360
        %1362 = vmatprep.subr.mxu0 0.0
        %v1363 = vand.u32 %v432, 4294901760
        %1364 = vmatpush1.xpose.msra.mxu0 %v1363
        %1365 = vmatprep.subr.mxu0 0.0
        %v1366 = vand.u32 %v435, 4294901760
        %1367 = vmatpush1.xpose.msra.mxu0 %v1366
        %1368 = vmatprep.subr.mxu0 0.0
        %v1369 = vand.u32 %v438, 4294901760
        %1370 = vmatpush1.xpose.msra.mxu0 %v1369
        %1371 = vmatprep.subr.mxu0 0.0
        %v1372 = vand.u32 %v441, 4294901760
        %1373 = vmatpush1.xpose.msra.mxu0 %v1372
        %1374 = vmatprep.subr.mxu0 0.0
        %v1375 = vand.u32 %v444, 4294901760
        %1376 = vmatpush1.xpose.msra.mxu0 %v1375
        %1377 = vmatprep.subr.mxu0 0.0
        %v1378 = vand.u32 %v447, 4294901760
        %1379 = vmatpush1.xpose.msra.mxu0 %v1378
        %1380 = vmatprep.subr.mxu0 0.0
        %v1381 = vand.u32 %v450, 4294901760
        %1382 = vmatpush1.xpose.msra.mxu0 %v1381
        %1383 = vmatprep.subr.mxu0 0.0
        %v1384 = vand.u32 %v453, 4294901760
        %1385 = vmatpush1.xpose.msra.mxu0 %v1384
        %1386 = vmatprep.subr.mxu0 0.0
        %v1387 = vand.u32 %v456, 4294901760
        %1388 = vmatpush1.xpose.msra.mxu0 %v1387
        %1389 = vmatprep.subr.mxu0 0.0
        %v1390 = vand.u32 %v459, 4294901760
        %1391 = vmatpush1.xpose.msra.mxu0 %v1390
        %1392 = vmatprep.subr.mxu0 0.0
        %v1393 = vand.u32 %v462, 4294901760
        %1394 = vmatpush1.xpose.msra.mxu0 %v1393
        %1395 = vmatprep.subr.mxu0 0.0
        %v1396 = vand.u32 %v465, 4294901760
        %1397 = vmatpush1.xpose.msra.mxu0 %v1396
        %1398 = vmatprep.subr.mxu0 0.0
        %v1399 = vand.u32 %v468, 4294901760
        %1400 = vmatpush1.xpose.msra.mxu0 %v1399
        %1401 = vmatprep.subr.mxu0 0.0
        %v1402 = vand.u32 %v471, 4294901760
        %1403 = vmatpush1.xpose.msra.mxu0 %v1402
        %1404 = vmatprep.subr.mxu0 0.0
        %v1405 = vand.u32 %v474, 4294901760
        %1406 = vmatpush1.xpose.msra.mxu0 %v1405
        %1407 = vmatprep.subr.mxu0 0.0
        %v1408 = vand.u32 %v477, 4294901760
        %1409 = vmatpush1.xpose.msra.mxu0 %v1408
        %1410 = vmatprep.subr.mxu0 0.0
        %v1411 = vand.u32 %v480, 4294901760
        %1412 = vmatpush1.xpose.msra.mxu0 %v1411
        %1413 = vmatprep.subr.mxu0 0.0
        %v1414 = vand.u32 %v483, 4294901760
        %1415 = vmatpush1.xpose.msra.mxu0 %v1414
        %1416 = vmatprep.subr.mxu0 0.0
        %v1417 = vand.u32 %v486, 4294901760
        %1418 = vmatpush1.xpose.msra.mxu0 %v1417
        %1419 = vmatprep.subr.mxu0 0.0
        %v1420 = vand.u32 %v489, 4294901760
        %1421 = vmatpush1.xpose.msra.mxu0 %v1420
        %1422 = vmatprep.subr.mxu0 0.0
        %v1423 = vand.u32 %v492, 4294901760
        %1424 = vmatpush1.xpose.msra.mxu0 %v1423
        %1425 = vmatprep.mubr.f32.mxu0 0.0
        %v1426 = vand.u32 %v390, 4294901760
        %1427 = vmatmul.mubr.f32.gmra.mrb[0].mxu0 %v1426
        %v1428 = vpop.f32.mrb[0].mxu0
        %v1429 = vadd.f32 %v1311, %v1428
        %v1430 = vpop.f32.mrb[0].mxu0
        %v1431 = vadd.f32 %v1313, %v1430
        %1432 = vmatprep.mubr.f32.mxu0 0.0
        %v1433 = vand.u32 %v393, 4294901760
        %1434 = vmatmul.mubr.f32.gmra.mrb[0].mxu0 %v1433
        %v1435 = vpop.f32.mrb[0].mxu0
        %v1436 = vadd.f32 %v1318, %v1435
        %v1437 = vpop.f32.mrb[0].mxu0
        %v1438 = vadd.f32 %v1320, %v1437
        %1439 = vmatprep.mubr.f32.mxu0 0.0
        %v1440 = vand.u32 %v396, 4294901760
        %1441 = vmatmul.mubr.f32.gmra.mrb[0].mxu0 %v1440
        %v1442 = vpop.f32.mrb[0].mxu0
        %v1443 = vadd.f32 %v1325, %v1442
        %v1444 = vpop.f32.mrb[0].mxu0
        %v1445 = vadd.f32 %v1327, %v1444
        %1446 = vdwg.mxu0
        %v1447 = vmax.f32 %v1429, 0.0
        %v1448 = vmax.f32 %v1431, 0.0
        %v1449 = vmax.f32 %v1436, 0.0
        %v1450 = vmax.f32 %v1438, 0.0
        %v1451 = vmax.f32 %v1443, 0.0
        %v1452 = vmax.f32 %v1445, 0.0
        %v1453 = vpack.c.bf16 %v1449, %v1447
        %v1454 = vpack.c.bf16 %v1450, %v1448
        %v1455 = vpack.c.bf16 %v1451, %v1451
        %v1456 = vpack.c.bf16 %v1452, %v1452
        %v1457 = vld [vmem:[%s3] sm:$0xf]
        %v1458 = vld [vmem:[%s3 + $0x4] sm:$0xf]
        %v1459 = vld [vmem:[%s3 + $0x8] sm:$0xf]
        %v1460 = vld [vmem:[%s3 + $0xc] sm:$0xf]
        %v1461 = vld [vmem:[%s3 + $0x10] sm:$0xf]
        %v1462 = vld [vmem:[%s4] sm:$0xff]
        %v1463 = vld [vmem:[%s4 + $0x8] sm:$0xff]
        %v1464 = vld [vmem:[%s4 + $0x10] sm:$0xff]
        %v1465 = vld [vmem:[%s4 + $0x18] sm:$0xff]
        %v1466 = vld [vmem:[%s4 + $0x20] sm:$0xff]
        %1468 = vset.pattern.permute.xlu0 0
        %1469 = vperm.xlu0 %1468, %v1462
        %v1470 = vpop.permute.xlu0 %1469
        %1473 = vset.pattern.permute.xlu0 0
        %1474 = vperm.xlu0 %1473, %v1463
        %v1475 = vpop.permute.xlu0 %1474
        %1478 = vset.pattern.permute.xlu0 0
        %1479 = vperm.xlu0 %1478, %v1464
        %v1480 = vpop.permute.xlu0 %1479
        %1483 = vset.pattern.permute.xlu0 0
        %1484 = vperm.xlu0 %1483, %v1465
        %v1485 = vpop.permute.xlu0 %1484
        %1488 = vset.pattern.permute.xlu0 0
        %1489 = vperm.xlu0 %1488, %v1466
        %v1490 = vpop.permute.xlu0 %1489
        %v1497 = vunpack.c.l.b16 %v1457
        %v1498 = vunpack.c.l.b16 %v1458
        %v1499 = vunpack.c.l.b16 %v1459
        %v1500 = vunpack.c.l.b16 %v1460
        %v1501 = vunpack.c.l.b16 %v1461
        %v1502 = vpack.c.b16 %v1498, %v1497
        %v1503 = vpack.c.b16 %v1500, %v1499
        %v1504 = vpack.c.b16 %v1501, %v1501
        %vm1505 = vcmask 162816
        %v1507 = vsel %vm1505, %v1502, 0
        %v1510 = vsel %vm1505, %v1503, 0
        %v1513 = vsel %vm1505, %v1504, 0
        %vm1515 = vcmask 1041408
        %v1517 = vsel %vm1515, %v1455, 0
        %v1520 = vsel %vm1515, %v1456, 0
        %1522 = vmatprep.subr.bf16.mxu0 %v1454
        %1523 = vmatpush1.bf16.msra.mxu0 %v1453
        %1524 = vmatprep.subr.bf16.mxu0 %v1520
        %1525 = vmatpush1.bf16.msra.mxu0 %v1517
        %1526 = vmatprep.subr.bf16.mxu0 0
        %1527 = vmatpush1.bf16.msra.mxu0 0
        %1528 = vmatprep.subr.bf16.mxu0 0
        %1529 = vmatpush1.bf16.msra.mxu0 0
        %1530 = vmatprep.subr.bf16.mxu0 0
        %1531 = vmatpush1.bf16.msra.mxu0 0
        %1532 = vmatprep.subr.bf16.mxu0 0
        %1533 = vmatpush1.bf16.msra.mxu0 0
        %1534 = vmatprep.subr.bf16.mxu0 0
        %1535 = vmatpush1.bf16.msra.mxu0 0
        %1536 = vmatprep.subr.bf16.mxu0 0
        %1537 = vmatpush1.bf16.msra.mxu0 0
        %1538 = vmatprep.subr.bf16.mxu0 0
        %1539 = vmatpush1.bf16.msra.mxu0 0
        %1540 = vmatprep.subr.bf16.mxu0 0
        %1541 = vmatpush1.bf16.msra.mxu0 0
        %1542 = vmatprep.subr.bf16.mxu0 0
        %1543 = vmatpush1.bf16.msra.mxu0 0
        %1544 = vmatprep.subr.bf16.mxu0 0
        %1545 = vmatpush1.bf16.msra.mxu0 0
        %1546 = vmatprep.subr.bf16.mxu0 0
        %1547 = vmatpush1.bf16.msra.mxu0 0
        %1548 = vmatprep.subr.bf16.mxu0 0
        %1549 = vmatpush1.bf16.msra.mxu0 0
        %1550 = vmatprep.subr.bf16.mxu0 0
        %1551 = vmatpush1.bf16.msra.mxu0 0
        %1552 = vmatprep.subr.bf16.mxu0 0
        %1553 = vmatpush1.bf16.msra.mxu0 0
        %1554 = vmatprep.mubr.bf16.mxu0 0
        %1555 = vmatmul.mubr.bf16.gmra.mrb[0].mxu0 %v1507
        %v1556 = vpop.f32.mrb[0].mxu0
        %v1557 = vadd.f32 %v1470, %v1556
        %v1558 = vpop.f32.mrb[0].mxu0
        %v1559 = vadd.f32 %v1470, %v1558
        %v1560 = vpop.f32.mrb[0].mxu0
        %v1561 = vadd.f32 %v1475, %v1560
        %v1562 = vpop.f32.mrb[0].mxu0
        %v1563 = vadd.f32 %v1475, %v1562
        %1564 = vmatprep.mubr.bf16.mxu0 0
        %1565 = vmatmul.mubr.bf16.gmra.mrb[0].mxu0 %v1510
        %v1566 = vpop.f32.mrb[0].mxu0
        %v1567 = vadd.f32 %v1480, %v1566
        %v1568 = vpop.f32.mrb[0].mxu0
        %v1569 = vadd.f32 %v1480, %v1568
        %v1570 = vpop.f32.mrb[0].mxu0
        %v1571 = vadd.f32 %v1485, %v1570
        %v1572 = vpop.f32.mrb[0].mxu0
        %v1573 = vadd.f32 %v1485, %v1572
        %1574 = vmatprep.mubr.bf16.mxu0 0
        %1575 = vmatmul.mubr.bf16.gmra.mrb[0].mxu0 %v1513
        %v1576 = vpop.f32.mrb[0].mxu0
        %v1577 = vadd.f32 %v1490, %v1576
        %v1578 = vpop.f32.mrb[0].mxu0
        %v1579 = vadd.f32 %v1490, %v1578
        %v1580 = vpop.f32.mrb[0].mxu0
        %v1581 = vpop.f32.mrb[0].mxu0
        %1582 = vdwg.mxu0
        %v1583 = vmax.f32 %v1557, 0.0
        %v1584 = vmax.f32 %v1559, 0.0
        %v1585 = vmax.f32 %v1561, 0.0
        %v1586 = vmax.f32 %v1563, 0.0
        %v1587 = vmax.f32 %v1567, 0.0
        %v1588 = vmax.f32 %v1569, 0.0
        %v1589 = vmax.f32 %v1571, 0.0
        %v1590 = vmax.f32 %v1573, 0.0
        %v1591 = vmax.f32 %v1577, 0.0
        %v1592 = vmax.f32 %v1579, 0.0
        %v1593 = vpack.c.bf16 %v1585, %v1583
        %v1594 = vpack.c.bf16 %v1586, %v1584
        %v1595 = vpack.c.bf16 %v1589, %v1587
        %v1596 = vpack.c.bf16 %v1590, %v1588
        %v1597 = vpack.c.bf16 %v1591, %v1591
        %v1598 = vpack.c.bf16 %v1592, %v1592
        %v1599 = vld [vmem:[%s5] sm:$0xf]
        %v1600 = vld [vmem:[%s5 + $0x4] sm:$0xf]
        %v1601 = vld [vmem:[%s5 + $0x8] sm:$0x3]
        %v1602 = vld [vmem:[%s6] sm:$0xff]
        %v1603 = vld [vmem:[%s6 + $0x8] sm:$0xff]
        %v1604 = vld [vmem:[%s6 + $0x10] sm:$0xf]
        %1606 = vset.pattern.permute.xlu0 0
        %1607 = vperm.xlu0 %1606, %v1602
        %v1608 = vpop.permute.xlu0 %1607
        %1611 = vset.pattern.permute.xlu0 0
        %1612 = vperm.xlu0 %1611, %v1603
        %v1613 = vpop.permute.xlu0 %1612
        %1616 = vset.pattern.permute.xlu0 0
        %1617 = vperm.xlu0 %1616, %v1604
        %v1618 = vpop.permute.xlu0 %1617
        %v1623 = vunpack.c.l.b16 %v1599
        %v1624 = vunpack.c.l.b16 %v1600
        %v1625 = vunpack.c.l.b16 %v1601
        %v1626 = vpack.c.b16 %v1624, %v1623
        %v1627 = vpack.c.b16 %v1625, %v1625
        %vm1628 = vcmask 326656
        %v1630 = vsel %vm1628, %v1626, 0
        %v1633 = vsel %vm1628, %v1627, 0
        %vm1635 = vcmask 1043456
        %v1637 = vsel %vm1635, %v1597, 0
        %v1640 = vsel %vm1635, %v1598, 0
        %1642 = vmatprep.subr.bf16.mxu0 %v1594
        %1643 = vmatpush1.bf16.msra.mxu0 %v1593
        %1644 = vmatprep.subr.bf16.mxu0 %v1596
        %1645 = vmatpush1.bf16.msra.mxu0 %v1595
        %1646 = vmatprep.subr.bf16.mxu0 %v1640
        %1647 = vmatpush1.bf16.msra.mxu0 %v1637
        %1648 = vmatprep.subr.bf16.mxu0 0
        %1649 = vmatpush1.bf16.msra.mxu0 0
        %1650 = vmatprep.subr.bf16.mxu0 0
        %1651 = vmatpush1.bf16.msra.mxu0 0
        %1652 = vmatprep.subr.bf16.mxu0 0
        %1653 = vmatpush1.bf16.msra.mxu0 0
        %1654 = vmatprep.subr.bf16.mxu0 0
        %1655 = vmatpush1.bf16.msra.mxu0 0
        %1656 = vmatprep.subr.bf16.mxu0 0
        %1657 = vmatpush1.bf16.msra.mxu0 0
        %1658 = vmatprep.subr.bf16.mxu0 0
        %1659 = vmatpush1.bf16.msra.mxu0 0
        %1660 = vmatprep.subr.bf16.mxu0 0
        %1661 = vmatpush1.bf16.msra.mxu0 0
        %1662 = vmatprep.subr.bf16.mxu0 0
        %1663 = vmatpush1.bf16.msra.mxu0 0
        %1664 = vmatprep.subr.bf16.mxu0 0
        %1665 = vmatpush1.bf16.msra.mxu0 0
        %1666 = vmatprep.subr.bf16.mxu0 0
        %1667 = vmatpush1.bf16.msra.mxu0 0
        %1668 = vmatprep.subr.bf16.mxu0 0
        %1669 = vmatpush1.bf16.msra.mxu0 0
        %1670 = vmatprep.subr.bf16.mxu0 0
        %1671 = vmatpush1.bf16.msra.mxu0 0
        %1672 = vmatprep.subr.bf16.mxu0 0
        %1673 = vmatpush1.bf16.msra.mxu0 0
        %1674 = vmatprep.mubr.bf16.mxu0 0
        %1675 = vmatmul.mubr.bf16.gmra.mrb[0].mxu0 %v1630
        %v1676 = vpop.f32.mrb[0].mxu0
        %v1677 = vadd.f32 %v1608, %v1676
        %v1678 = vpop.f32.mrb[0].mxu0
        %v1679 = vadd.f32 %v1608, %v1678
        %v1680 = vpop.f32.mrb[0].mxu0
        %v1681 = vadd.f32 %v1613, %v1680
        %v1682 = vpop.f32.mrb[0].mxu0
        %v1683 = vadd.f32 %v1613, %v1682
        %1684 = vmatprep.mubr.bf16.mxu0 0
        %1685 = vmatmul.mubr.bf16.gmra.mrb[0].mxu0 %v1633
        %v1686 = vpop.f32.mrb[0].mxu0
        %v1687 = vadd.f32 %v1618, %v1686
        %v1688 = vpop.f32.mrb[0].mxu0
        %v1689 = vadd.f32 %v1618, %v1688
        %v1690 = vpop.f32.mrb[0].mxu0
        %v1691 = vpop.f32.mrb[0].mxu0
        %1692 = vdwg.mxu0
        %v1693 = vmax.f32 %v1677, 0.0
        %v1694 = vmax.f32 %v1679, 0.0
        %v1695 = vmax.f32 %v1681, 0.0
        %v1696 = vmax.f32 %v1683, 0.0
        %v1697 = vmax.f32 %v1687, 0.0
        %v1698 = vmax.f32 %v1689, 0.0
        %v1699 = vpack.c.bf16 %v1695, %v1693
        %v1700 = vpack.c.bf16 %v1696, %v1694
        %v1701 = vpack.c.bf16 %v1697, %v1697
        %v1702 = vpack.c.bf16 %v1698, %v1698
        %v1703 = vld [vmem:[%s7] sm:$0x1]
        %v1704 = vld [vmem:[%s8] sm:$0x3]
        %1706 = vset.pattern.permute.xlu0 0
        %1707 = vperm.xlu0 %1706, %v1704
        %v1708 = vpop.permute.xlu0 %1707
        %v1711 = vsel %vm1505, %v1703, 0
        %v1714 = vsel %vm1515, %v1701, 0
        %v1717 = vsel %vm1515, %v1702, 0
        %1719 = vmatprep.subr.bf16.mxu0 %v1700
        %1720 = vmatpush1.bf16.msra.mxu0 %v1699
        %1721 = vmatprep.subr.bf16.mxu0 %v1717
        %1722 = vmatpush1.bf16.msra.mxu0 %v1714
        %1723 = vmatprep.subr.bf16.mxu0 0
        %1724 = vmatpush1.bf16.msra.mxu0 0
        %1725 = vmatprep.subr.bf16.mxu0 0
        %1726 = vmatpush1.bf16.msra.mxu0 0
        %1727 = vmatprep.subr.bf16.mxu0 0
        %1728 = vmatpush1.bf16.msra.mxu0 0
        %1729 = vmatprep.subr.bf16.mxu0 0
        %1730 = vmatpush1.bf16.msra.mxu0 0
        %1731 = vmatprep.subr.bf16.mxu0 0
        %1732 = vmatpush1.bf16.msra.mxu0 0
        %1733 = vmatprep.subr.bf16.mxu0 0
        %1734 = vmatpush1.bf16.msra.mxu0 0
        %1735 = vmatprep.subr.bf16.mxu0 0
        %1736 = vmatpush1.bf16.msra.mxu0 0
        %1737 = vmatprep.subr.bf16.mxu0 0
        %1738 = vmatpush1.bf16.msra.mxu0 0
        %1739 = vmatprep.subr.bf16.mxu0 0
        %1740 = vmatpush1.bf16.msra.mxu0 0
        %1741 = vmatprep.subr.bf16.mxu0 0
        %1742 = vmatpush1.bf16.msra.mxu0 0
        %1743 = vmatprep.subr.bf16.mxu0 0
        %1744 = vmatpush1.bf16.msra.mxu0 0
        %1745 = vmatprep.subr.bf16.mxu0 0
        %1746 = vmatpush1.bf16.msra.mxu0 0
        %1747 = vmatprep.subr.bf16.mxu0 0
        %1748 = vmatpush1.bf16.msra.mxu0 0
        %1749 = vmatprep.subr.bf16.mxu0 0
        %1750 = vmatpush1.bf16.msra.mxu0 0
        %1751 = vmatprep.mubr.bf16.mxu0 0
        %1752 = vmatmul.mubr.bf16.gmra.mrb[0].mxu0 %v1711
        %v1753 = vpop.f32.mrb[0].mxu0
        %v1754 = vadd.f32 %v1708, %v1753
        %v1755 = vpop.f32.mrb[0].mxu0
        %v1756 = vadd.f32 %v1708, %v1755
        %v1757 = vpop.f32.mrb[0].mxu0
        %v1758 = vpop.f32.mrb[0].mxu0
        %1759 = vdwg.mxu0
        %v1762 = vcombine.low %v1754, %v1756
        %v1764 = vunpack.c.l.s4 1983009808
        %v1765 = vunpack.c.0.s8 %v1764
        %v1766 = vlaneseq
        %v1767 = vshrl.u32 %v1766, 7
        %v1768 = vsub.s32 %v1765, %v1767
        %v1769 = vrot.slane %v1762, %v1768
        %1771 = vst [vmem:[%s326] sm:$0xf] %v1769
        %s1772 = sand.u32 %s225, 1
        %s1773 = scalar_lea.sflag [#allocation3], %s1772
        %s1774 = sand.u32 %s225, 1
        %s1775 = smul.addr %s1774, 4
        %s1776 = scalar_lea.vmem [#allocation2], %s1775
        // Predicated region
        $region57: #{tpu_custom_call.1} parent=55 // pred_check
          %p1777 = pneg %p235
        $region58: #{tpu_custom_call.1} parent=55 // pred_check_branch
          %1779 = sbr.rel (%p1777) target = $region60
        $region59: #{tpu_custom_call.1} parent=55 // pred_region
          %s1780 = smul.u32 2, %s23
          %s1782 = ssub.s32 64, 64
          %1783 = vsyncadd %s1773, %s1782
          %s1784 = smul.addr %s1780, 32
          %s1785 = scalar_lea.hbm %s9, %s1784
          %s1787 = sshll.u32 %s1776, 4
          %s1788 = int_to_ptr.vmem [resolvable:$true] %s1787
          %1790 = dma.vmem_to_hbm [thread:$0]  %s1788, 64, %s1785, %s1773
        $region60: #{tpu_custom_call.1} parent=55 // pred_fallthru
          _
      $region56: #{tpu_custom_call.1} parent=5 // pred_fallthru
        _
      %p1791 = scmp.le.s32.totalorder 2, %s18
      // Predicated region
      $region61: #{tpu_custom_call.1} parent=5 // pred_check
        %p1792 = pneg %p1791
      $region62: #{tpu_custom_call.1} parent=5 // pred_check_branch
        %1794 = sbr.rel (%p1792) target = $region64
      $region63: #{tpu_custom_call.1} parent=5 // pred_region
        %s1795 = ssub.s32 %s18, 2
        // Predicated region
        $region65: #{tpu_custom_call.1} parent=63 // pred_check
          %p1796 = pneg %p241
        $region66: #{tpu_custom_call.1} parent=63 // pred_check_branch
          %1798 = sbr.rel (%p1796) target = $region68
        $region67: #{tpu_custom_call.1} parent=63 // pred_region
          %s1799 = sand.u32 %s226, 1
          %s1800 = scalar_lea.sflag [#allocation3], %s1799
          %s1801 = sand.u32 %s226, 1
          %s1802 = smul.addr %s1801, 4
          %s1803 = scalar_lea.vmem [#allocation2], %s1802
          %1804 = dma.done %s1800, 64
        $region68: #{tpu_custom_call.1} parent=63 // pred_fallthru
          _
      $region64: #{tpu_custom_call.1} parent=5 // pred_fallthru
        _
    $region6: #{tpu_custom_call.1} parent=1 // loop_footer
      %s22 = sadd.s32 1, %s18
    $region7: #{tpu_custom_call.1} parent=1 // loop_footer_branch
      %17 = sbr.rel target = $region3
    $region8: #{tpu_custom_call.1} parent=1 // loop_exit
      _
    %1805 = vsyncpa [#allocation3], 1
    %s1806 = scalar_lea.sflag [#allocation3], 1
    %1807 = vsyncpa %s1806, 1

</llo_original>
